<compile_context>
chip_gen: v6e
topology: v6e:2x2x1
jax: 0.10.0
libtpu: 0.0.40
codegen_flags: <defaults>
</compile_context>

<pallas_src>
import jax
import jax.numpy as jnp
import numpy as np
from jax.experimental import pallas as pl
from jax.experimental.pallas import tpu as pltpu


# ----------------------------------------------------------------------------
# Fused kernel: 1x1 conv+BN+GELU -> dw 3x3 s2 conv+BN+GELU -> 1x1 conv+BN.
# One (batch, row-strip) tile per grid step; intermediates never touch HBM.
# ----------------------------------------------------------------------------
def _fused_patch_merging_kernel(xm_ref, xp_ref, w1_ref, b1_ref, w2_ref, b2_ref,
                                w3_ref, b3_ref, o_ref):
    # Per grid step:
    #   xm_ref : (1, 2*TH, Wo, 2*Cin)  column-pair-packed input rows of strip
    #   xp_ref : (1, 1,    Wo, 2*Cin)  row just above the strip (zeroed at s==0)
    #   w1_ref : (2*Cin, 2*C)  block-diagonal 1x1 weights (BN scale folded)
    #   b1_ref : (1, 2*C)      (bias tiled twice: even / odd column halves)
    #   w2_ref : (9, 1, C)     depthwise 3x3 taps (BN scale folded)
    #   b2_ref : (1, 1, C)
    #   w3_ref : (C, C)        1x1 weights (BN scale folded)
    #   b3_ref : (1, C)
    #   o_ref  : (1, TH, Wo, C)
    TH, Wo, C = o_ref.shape[1], o_ref.shape[2], o_ref.shape[3]
    Cin2 = xm_ref.shape[3]

    w1 = w1_ref[...]
    b1 = b1_ref[...]

    # ---- stage 1: 1x1 conv (+folded BN) + GELU -------------------------------
    # Single block-diagonal MXU dot: lanes [:C] = conv1 of even original
    # columns, lanes [C:] = conv1 of odd original columns.  The split below is
    # therefore a C-aligned lane slab select (free when C % 128 == 0).
    hm = jnp.dot(xm_ref[0].reshape(2 * TH * Wo, Cin2), w1,
                 preferred_element_type=jnp.float32)
    hm = jax.nn.gelu(hm + b1, approximate=True).reshape(2 * TH, Wo, 2 * C)

    hp = jnp.dot(xp_ref[0].reshape(Wo, Cin2), w1,
                 preferred_element_type=jnp.float32)
    hp = jax.nn.gelu(hp + b1, approximate=True)
    # The row above the first strip is conv2's zero padding.
    hp = hp * jnp.where(pl.program_id(1) == 0, 0.0, 1.0)
    hp = hp.reshape(1, Wo, 2 * C)

    he, ho = hm[..., :C], hm[..., C:]          # even / odd original columns
    pe, po = hp[..., :C], hp[..., C:]

    # Row-parity split: leading-dim reshape + slab select (no lane/sublane work).
    her = he.reshape(TH, 2, Wo, C)
    hor = ho.reshape(TH, 2, Wo, C)
    me_he, mo_he = her[:, 0], her[:, 1]        # even / odd strip rows, even cols
    me_ho, mo_ho = hor[:, 0], hor[:, 1]        # even / odd strip rows, odd cols

    # "Row above each output row": [halo, odd strip rows 0..TH-2].
    if TH > 1:
        r0_he = jnp.concatenate([pe, mo_he[:TH - 1]], axis=0)
        r0_ho = jnp.concatenate([po, mo_ho[:TH - 1]], axis=0)
    else:
        r0_he, r0_ho = pe, po

    # ---- stage 2: depthwise 3x3, stride 2 (+folded BN) + GELU -----------------
    # Output (i, j), tap (kh, kw) reads stage-1 activation at row 2i+kh-1,
    # col 2j+kw-1 (zero outside).  kw==0 needs the left neighbour of the odd
    # columns: XLU sublane roll + hoisted first-column mask (no VMEM copies).
    not_first_col = jax.lax.broadcasted_iota(jnp.int32, (1, Wo, C), 1) > 0

    def left(t):
        return jnp.where(not_first_col, pltpu.roll(t, shift=1, axis=1), 0.0)

    w2 = w2_ref[...]                                            # (9, 1, C)
    w2b = [jnp.broadcast_to(w2[k], (Wo, C)) for k in range(9)]  # hoisted bcasts
    b2 = b2_ref[...]

    row_taps = ((r0_he, r0_ho), (me_he, me_ho), (mo_he, mo_ho))
    acc = jnp.zeros((TH, Wo, C), jnp.float32)
    for kh in range(3):
        rhe, rho = row_taps[kh]
        acc = acc + left(rho) * w2b[3 * kh + 0]   # kw = 0
        acc = acc + rhe * w2b[3 * kh + 1]         # kw = 1
        acc = acc + rho * w2b[3 * kh + 2]         # kw = 2
    y2 = jax.nn.gelu(acc + b2, approximate=True)

    # ---- stage 3: 1x1 conv (+folded BN) ---------------------------------------
    w3 = w3_ref[...]
    y3 = jnp.dot(y2.reshape(TH * Wo, C).astype(w3.dtype), w3,
                 preferred_element_type=jnp.float32) + b3_ref[...]
    o_ref[0] = y3.reshape(TH, Wo, C).astype(o_ref.dtype)


# ----------------------------------------------------------------------------
# Row-strip (TH) selection with a VMEM budget (safe for v7x's 64 MiB VMEM).
# ----------------------------------------------------------------------------
def _vmem_bytes_estimate(th, wo, cin, c, io_bytes):
    in_blk = 2 * (2 * th) * wo * (2 * cin) * io_bytes       # double-buffered strip
    halo = 2 * wo * (2 * cin) * io_bytes
    out_blk = 2 * th * wo * c * io_bytes
    weights = (4 * cin * c + c * c) * io_bytes + 14 * c * 4
    inter = 12 * th * wo * c * 4                             # f32 stage-1/2 live set
    return in_blk + halo + out_blk + weights + inter


def _pick_row_tile(ho, n_batch, wo, cin, c, io_bytes, target=32,
                   budget=36 * 1024 * 1024):
    # TODO(synk): support ragged Ho (non-dividing TH) via a masked last strip;
    # realistic backbone resolutions always have a good divisor.
    cands = [d for d in range(1, ho + 1)
             if ho % d == 0 and _vmem_bytes_estimate(d, wo, cin, c, io_bytes) <= budget]
    if not cands:
        cands = [1]
    if n_batch == 1:                      # keep >= 2 grid steps (v7x: 2 TCs/chip)
        multi = [d for d in cands if ho // d >= 2]
        if multi:
            cands = multi
    under = [d for d in cands if d <= target]
    return max(under) if under else min(cands)


# ----------------------------------------------------------------------------
# NHWC perf path: no layout transposes, bf16-friendly I/O.
# ----------------------------------------------------------------------------
def patch_merging_forward_nhwc(x, params, *, row_tile=32, io_dtype=None):
    B, H, W, Cin = x.shape
    assert H % 2 == 0 and W % 2 == 0, (H, W)   # TODO(synk): odd H/W ceil mode
    Ho, Wo = H // 2, W // 2
    C = params["w1"].shape[1]
    io_dtype = x.dtype if io_dtype is None else jnp.dtype(io_dtype)
    io_bytes = jnp.dtype(io_dtype).itemsize

    TH = _pick_row_tile(Ho, B, Wo, Cin, C, io_bytes, target=row_tile)
    n_strips = Ho // TH

    # Pack column pairs into the channel (lane) dim — a free contiguous
    # reshape, so the stride-2 conv never needs strided HBM / lane access.
    xr = x.astype(io_dtype).reshape(B, H, Wo, 2 * Cin)

    f32 = jnp.float32
    w1s = (params["w1"] * params["s1"][None, :]).astype(f32)          # (Cin, C)
    w1bd = jnp.zeros((2 * Cin, 2 * C), f32)
    w1bd = w1bd.at[:Cin, :C].set(w1s).at[Cin:, C:].set(w1s).astype(io_dtype)
    b1 = jnp.tile(params["b1"].reshape(1, C), (1, 2)).astype(f32)     # (1, 2C)
    w2 = (params["w2"] * params["s2"]).reshape(9, 1, C).astype(f32)
    b2 = params["b2"].reshape(1, 1, C).astype(f32)
    w3 = (params["w3"] * params["s3"][None, :]).astype(io_dtype)      # (C, C)
    b3 = params["b3"].reshape(1, C).astype(f32)

    main_spec = pl.BlockSpec((1, 2 * TH, Wo, 2 * Cin), lambda b, s: (b, s, 0, 0))
    prev_spec = pl.BlockSpec(
        (1, 1, Wo, 2 * Cin),
        lambda b, s: (b, jnp.maximum(2 * TH * s - 1, 0), 0, 0))

    def full(shape):
        return pl.BlockSpec(shape, lambda b, s: (0,) * len(shape))

    est = _vmem_bytes_estimate(TH, Wo, Cin, C, io_bytes)
    vmem_limit = int(min(48 * 1024 * 1024, max(32 * 1024 * 1024, 2 * est)))

    out = pl.pallas_call(
        _fused_patch_merging_kernel,
        out_shape=jax.ShapeDtypeStruct((B, Ho, Wo, C), io_dtype),
        grid=(B, n_strips),
        in_specs=[
            main_spec, prev_spec,
            full((2 * Cin, 2 * C)), full((1, 2 * C)),
            full((9, 1, C)), full((1, 1, C)),
            full((C, C)), full((1, C)),
        ],
        out_specs=pl.BlockSpec((1, TH, Wo, C), lambda b, s: (b, s, 0, 0)),
        compiler_params=pltpu.CompilerParams(
            dimension_semantics=("parallel", "parallel"),
            vmem_limit_bytes=vmem_limit),
    )(xr, xr, w1bd, b1, w2, b2, w3, b3)
    return out                                                       # NHWC


# ----------------------------------------------------------------------------
# NCHW compat wrapper (PyTorch module layout).  Perf-critical callers should
# use patch_merging_forward_nhwc directly to avoid the two HBM transposes.
# ----------------------------------------------------------------------------
def patch_merging_forward(x_nchw, params, **kw):
    x = jnp.transpose(x_nchw, (0, 2, 3, 1))
    y = patch_merging_forward_nhwc(x, params, **kw)
    return jnp.transpose(y, (0, 3, 1, 2))


# ----------------------------------------------------------------------------
# Pure-JAX reference (unfused math, for correctness check).
# ----------------------------------------------------------------------------
def reference_forward_nhwc(x, params):
    x = jnp.einsum("bhwc,co->bhwo", x.astype(jnp.float32),
                   params["w1"]) * params["s1"] + params["b1"]
    x = jax.nn.gelu(x, approximate=True)
    B, H, W, C = x.shape
    Ho, Wo = H // 2, W // 2
    xp = jnp.pad(x, ((0, 0), (1, 1), (1, 1), (0, 0)))
    y = jnp.zeros((B, Ho, Wo, C), x.dtype)
    for kh in range(3):
        for kw in range(3):
            y = y + xp[:, kh:kh + 2 * Ho:2, kw:kw + 2 * Wo:2, :] * params["w2"][kh, kw]
    y = y * params["s2"] + params["b2"]
    y = jax.nn.gelu(y, approximate=True)
    y = jnp.einsum("bhwc,co->bhwo", y, params["w3"]) * params["s3"] + params["b3"]
    return y


def reference_forward(x_nchw, params):
    y = reference_forward_nhwc(jnp.transpose(x_nchw, (0, 2, 3, 1)), params)
    return jnp.transpose(y, (0, 3, 1, 2))


def fuse_bn(gamma, beta, mean, var, eps=1e-5):
    scale = gamma / jnp.sqrt(var + eps)
    shift = beta - mean * scale
    return scale, shift


def make_params(key, dim, out_dim):
    ks = jax.random.split(key, 9)
    W1 = jax.random.normal(ks[0], (out_dim, dim), jnp.float32) * 0.2       # 1x1: (O, I)
    W2 = jax.random.normal(ks[1], (out_dim, 3, 3), jnp.float32) * 0.2      # dw: (C, 3, 3)
    W3 = jax.random.normal(ks[2], (out_dim, out_dim), jnp.float32) * 0.2   # 1x1: (O, I)
    params = {}

    def bn(kmean, kvar, c):
        gamma = jnp.ones((c,), jnp.float32)
        beta = jnp.zeros((c,), jnp.float32)
        mean = 0.1 * jax.random.normal(kmean, (c,), jnp.float32)
        var = jax.random.uniform(kvar, (c,), jnp.float32, 0.5, 1.5)
        return fuse_bn(gamma, beta, mean, var)

    params["w1"] = W1.T                              # (dim, out_dim)
    params["s1"], params["b1"] = bn(ks[3], ks[4], out_dim)
    params["w2"] = jnp.transpose(W2, (1, 2, 0))      # (3, 3, out_dim)
    params["s2"], params["b2"] = bn(ks[5], ks[6], out_dim)
    params["w3"] = W3.T                              # (out_dim, out_dim)
    params["s3"], params["b3"] = bn(ks[7], ks[8], out_dim)
    return params


if __name__ == "__main__":
    B, dim, out_dim, H, W = 2, 4, 8, 16, 16
    key = jax.random.PRNGKey(0)
    kx, kp = jax.random.split(key)
    x_nchw = jax.random.normal(kx, (B, dim, H, W), jnp.float32)   # NCHW, as PyTorch
    params = make_params(kp, dim, out_dim)

    # 1) PyTorch-layout (NCHW) parity path, f32 I/O: strict numeric check.
    fwd_nchw = jax.jit(lambda a, p: patch_merging_forward(a, p, io_dtype=jnp.float32))
    out = jax.block_until_ready(fwd_nchw(x_nchw, params))
    ref = jax.block_until_ready(reference_forward(x_nchw, params))
    assert out.shape == (B, out_dim, H // 2, W // 2), out.shape
    np.testing.assert_allclose(np.asarray(out), np.asarray(ref),
                               rtol=1e-3, atol=1e-3)

    # 2) Transpose-free NHWC path with bf16 HBM I/O + bf16 MXU operands
    #    (the recommended perf path); f32 accumulation inside the kernel.
    x_nhwc16 = jnp.transpose(x_nchw, (0, 2, 3, 1)).astype(jnp.bfloat16)
    fwd_nhwc = jax.jit(patch_merging_forward_nhwc)
    out16 = jax.block_until_ready(fwd_nhwc(x_nhwc16, params))
    ref_nhwc = jax.block_until_ready(
        reference_forward_nhwc(jnp.transpose(x_nchw, (0, 2, 3, 1)), params))
    assert out16.dtype == jnp.bfloat16
    assert out16.shape == (B, H // 2, W // 2, out_dim), out16.shape
    np.testing.assert_allclose(np.asarray(out16.astype(jnp.float32)),
                               np.asarray(ref_nhwc), rtol=5e-2, atol=5e-2)

    print("KERNEL_OK")
</pallas_src>

<mosaic_0001>
module attributes {stable_mosaic.version = 11 : i64} {
  func.func @_fused_patch_merging_kernel(%arg0: i32, %arg1: i32, %arg2: memref<1x16x8x8xf32, #tpu.memory_space<vmem>>, %arg3: memref<1x1x8x8xf32, #tpu.memory_space<vmem>>, %arg4: memref<8x16xf32, #tpu.memory_space<vmem>>, %arg5: memref<1x16xf32, #tpu.memory_space<vmem>>, %arg6: memref<9x1x8xf32, #tpu.memory_space<vmem>>, %arg7: memref<1x1x8xf32, #tpu.memory_space<vmem>>, %arg8: memref<8x8xf32, #tpu.memory_space<vmem>>, %arg9: memref<1x8xf32, #tpu.memory_space<vmem>>, %arg10: memref<1x8x8x8xf32, #tpu.memory_space<vmem>>) attributes {dimension_semantics = [#tpu.dimension_semantics<parallel>, #tpu.dimension_semantics<parallel>], iteration_bounds = array<i64: 2, 1>, scalar_prefetch = 0 : i64, scratch_operands = 0 : i64, tpu.core_type = #tpu.core_type<tc>, window_params = [{transform_indices = @transform_0, window_bounds = array<i64: 1, 16, 8, 8>}, {transform_indices = @transform_1, window_bounds = array<i64: 1, 1, 8, 8>}, {pipeline_mode = #tpu.pipeline_mode<synchronous>, transform_indices = @transform_2, window_bounds = array<i64: 8, 16>}, {pipeline_mode = #tpu.pipeline_mode<synchronous>, transform_indices = @transform_3, window_bounds = array<i64: 1, 16>}, {pipeline_mode = #tpu.pipeline_mode<synchronous>, transform_indices = @transform_4, window_bounds = array<i64: 9, 1, 8>}, {pipeline_mode = #tpu.pipeline_mode<synchronous>, transform_indices = @transform_5, window_bounds = array<i64: 1, 1, 8>}, {pipeline_mode = #tpu.pipeline_mode<synchronous>, transform_indices = @transform_6, window_bounds = array<i64: 8, 8>}, {pipeline_mode = #tpu.pipeline_mode<synchronous>, transform_indices = @transform_7, window_bounds = array<i64: 1, 8>}, {transform_indices = @transform_8, window_bounds = array<i64: 1, 8, 8, 8>}]} {
    %c0 = arith.constant 0 : index
    %c0_0 = arith.constant 0 : index
    %0 = vector.load %arg4[%c0, %c0_0] : memref<8x16xf32, #tpu.memory_space<vmem>>, vector<8x16xf32>
    %c0_1 = arith.constant 0 : index
    %c0_2 = arith.constant 0 : index
    %1 = vector.load %arg5[%c0_1, %c0_2] : memref<1x16xf32, #tpu.memory_space<vmem>>, vector<1x16xf32>
    %c0_3 = arith.constant 0 : index
    %c0_4 = arith.constant 0 : index
    %c0_5 = arith.constant 0 : index
    %c0_6 = arith.constant 0 : index
    %2 = vector.load %arg2[%c0_3, %c0_4, %c0_5, %c0_6] : memref<1x16x8x8xf32, #tpu.memory_space<vmem>>, vector<1x16x8x8xf32>
    %3 = vector.shape_cast %2 : vector<1x16x8x8xf32> to vector<16x8x8xf32>
    %4 = vector.shape_cast %3 : vector<16x8x8xf32> to vector<128x8xf32>
    %cst = arith.constant dense<0.000000e+00> : vector<128x16xf32>
    %5 = tpu.matmul %4, %0, %cst {dimension_numbers = #tpu.dot_dimension_numbers<[1], [0], [0], [1], [0, 0, 1, 1], [], []>} : vector<128x8xf32>, vector<8x16xf32>, vector<128x16xf32> -> vector<128x16xf32>
    %6 = vector.broadcast %1 : vector<1x16xf32> to vector<128x16xf32>
    %7 = arith.addf %5, %6 : vector<128x16xf32>
    %8 = arith.mulf %7, %7 : vector<128x16xf32>
    %9 = arith.mulf %7, %8 : vector<128x16xf32>
    %cst_7 = arith.constant 4.471500e-02 : f32
    %10 = vector.broadcast %cst_7 : f32 to vector<128x16xf32>
    %11 = arith.mulf %10, %9 : vector<128x16xf32>
    %12 = arith.addf %7, %11 : vector<128x16xf32>
    %cst_8 = arith.constant 0.797884583 : f32
    %13 = vector.broadcast %cst_8 : f32 to vector<128x16xf32>
    %14 = arith.mulf %13, %12 : vector<128x16xf32>
    %15 = math.tanh %14 : vector<128x16xf32>
    %cst_9 = arith.constant 1.000000e+00 : f32
    %16 = vector.broadcast %cst_9 : f32 to vector<128x16xf32>
    %17 = arith.addf %16, %15 : vector<128x16xf32>
    %cst_10 = arith.constant 5.000000e-01 : f32
    %18 = vector.broadcast %cst_10 : f32 to vector<128x16xf32>
    %19 = arith.mulf %18, %17 : vector<128x16xf32>
    %20 = arith.mulf %7, %19 : vector<128x16xf32>
    %21 = vector.shape_cast %20 : vector<128x16xf32> to vector<16x8x16xf32>
    %c0_11 = arith.constant 0 : index
    %c0_12 = arith.constant 0 : index
    %c0_13 = arith.constant 0 : index
    %c0_14 = arith.constant 0 : index
    %22 = vector.load %arg3[%c0_11, %c0_12, %c0_13, %c0_14] : memref<1x1x8x8xf32, #tpu.memory_space<vmem>>, vector<1x1x8x8xf32>
    %23 = vector.shape_cast %22 : vector<1x1x8x8xf32> to vector<1x8x8xf32>
    %24 = vector.shape_cast %23 : vector<1x8x8xf32> to vector<8x8xf32>
    %cst_15 = arith.constant dense<0.000000e+00> : vector<8x16xf32>
    %25 = tpu.matmul %24, %0, %cst_15 {dimension_numbers = #tpu.dot_dimension_numbers<[1], [0], [0], [1], [0, 0, 1, 1], [], []>} : vector<8x8xf32>, vector<8x16xf32>, vector<8x16xf32> -> vector<8x16xf32>
    %26 = vector.broadcast %1 : vector<1x16xf32> to vector<8x16xf32>
    %27 = arith.addf %25, %26 : vector<8x16xf32>
    %28 = arith.mulf %27, %27 : vector<8x16xf32>
    %29 = arith.mulf %27, %28 : vector<8x16xf32>
    %cst_16 = arith.constant 4.471500e-02 : f32
    %30 = vector.broadcast %cst_16 : f32 to vector<8x16xf32>
    %31 = arith.mulf %30, %29 : vector<8x16xf32>
    %32 = arith.addf %27, %31 : vector<8x16xf32>
    %cst_17 = arith.constant 0.797884583 : f32
    %33 = vector.broadcast %cst_17 : f32 to vector<8x16xf32>
    %34 = arith.mulf %33, %32 : vector<8x16xf32>
    %35 = math.tanh %34 : vector<8x16xf32>
    %cst_18 = arith.constant 1.000000e+00 : f32
    %36 = vector.broadcast %cst_18 : f32 to vector<8x16xf32>
    %37 = arith.addf %36, %35 : vector<8x16xf32>
    %cst_19 = arith.constant 5.000000e-01 : f32
    %38 = vector.broadcast %cst_19 : f32 to vector<8x16xf32>
    %39 = arith.mulf %38, %37 : vector<8x16xf32>
    %40 = arith.mulf %27, %39 : vector<8x16xf32>
    %c0_i32 = arith.constant 0 : i32
    %41 = arith.cmpi eq, %arg1, %c0_i32 : i32
    %cst_20 = arith.constant 0.000000e+00 : f32
    %cst_21 = arith.constant 1.000000e+00 : f32
    %42 = arith.select %41, %cst_20, %cst_21 : f32
    %43 = vector.broadcast %42 : f32 to vector<8x16xf32>
    %44 = arith.mulf %40, %43 : vector<8x16xf32>
    %45 = vector.shape_cast %44 : vector<8x16xf32> to vector<1x8x16xf32>
    %46 = vector.extract_strided_slice %21 {offsets = [0, 0, 0], sizes = [16, 8, 8], strides = [1, 1, 1]} : vector<16x8x16xf32> to vector<16x8x8xf32>
    %47 = vector.extract_strided_slice %21 {offsets = [0, 0, 8], sizes = [16, 8, 8], strides = [1, 1, 1]} : vector<16x8x16xf32> to vector<16x8x8xf32>
    %48 = vector.extract_strided_slice %45 {offsets = [0, 0, 0], sizes = [1, 8, 8], strides = [1, 1, 1]} : vector<1x8x16xf32> to vector<1x8x8xf32>
    %49 = vector.extract_strided_slice %45 {offsets = [0, 0, 8], sizes = [1, 8, 8], strides = [1, 1, 1]} : vector<1x8x16xf32> to vector<1x8x8xf32>
    %50 = vector.shape_cast %46 : vector<16x8x8xf32> to vector<8x2x8x8xf32>
    %51 = vector.shape_cast %47 : vector<16x8x8xf32> to vector<8x2x8x8xf32>
    %52 = vector.extract_strided_slice %50 {offsets = [0, 0, 0, 0], sizes = [8, 1, 8, 8], strides = [1, 1, 1, 1]} : vector<8x2x8x8xf32> to vector<8x1x8x8xf32>
    %53 = vector.shape_cast %52 : vector<8x1x8x8xf32> to vector<8x8x8xf32>
    %54 = vector.extract_strided_slice %50 {offsets = [0, 1, 0, 0], sizes = [8, 1, 8, 8], strides = [1, 1, 1, 1]} : vector<8x2x8x8xf32> to vector<8x1x8x8xf32>
    %55 = vector.shape_cast %54 : vector<8x1x8x8xf32> to vector<8x8x8xf32>
    %56 = vector.extract_strided_slice %51 {offsets = [0, 0, 0, 0], sizes = [8, 1, 8, 8], strides = [1, 1, 1, 1]} : vector<8x2x8x8xf32> to vector<8x1x8x8xf32>
    %57 = vector.shape_cast %56 : vector<8x1x8x8xf32> to vector<8x8x8xf32>
    %58 = vector.extract_strided_slice %51 {offsets = [0, 1, 0, 0], sizes = [8, 1, 8, 8], strides = [1, 1, 1, 1]} : vector<8x2x8x8xf32> to vector<8x1x8x8xf32>
    %59 = vector.shape_cast %58 : vector<8x1x8x8xf32> to vector<8x8x8xf32>
    %60 = vector.extract_strided_slice %55 {offsets = [0, 0, 0], sizes = [7, 8, 8], strides = [1, 1, 1]} : vector<8x8x8xf32> to vector<7x8x8xf32>
    %61 = tpu.concatenate %48, %60 in 0 : vector<1x8x8xf32>, vector<7x8x8xf32> -> vector<8x8x8xf32>
    %62 = vector.extract_strided_slice %59 {offsets = [0, 0, 0], sizes = [7, 8, 8], strides = [1, 1, 1]} : vector<8x8x8xf32> to vector<7x8x8xf32>
    %63 = tpu.concatenate %49, %62 in 0 : vector<1x8x8xf32>, vector<7x8x8xf32> -> vector<8x8x8xf32>
    %64 = tpu.iota {dimensions = array<i32: 1>} : vector<1x8x8xi32>
    %c0_i32_22 = arith.constant 0 : i32
    %65 = vector.broadcast %c0_i32_22 : i32 to vector<1x8x8xi32>
    %66 = arith.cmpi sgt, %64, %65 : vector<1x8x8xi32>
    %c0_23 = arith.constant 0 : index
    %c0_24 = arith.constant 0 : index
    %c0_25 = arith.constant 0 : index
    %67 = vector.load %arg6[%c0_23, %c0_24, %c0_25] : memref<9x1x8xf32, #tpu.memory_space<vmem>>, vector<9x1x8xf32>
    %68 = vector.extract_strided_slice %67 {offsets = [0, 0, 0], sizes = [1, 1, 8], strides = [1, 1, 1]} : vector<9x1x8xf32> to vector<1x1x8xf32>
    %69 = vector.shape_cast %68 : vector<1x1x8xf32> to vector<1x8xf32>
    %70 = vector.shape_cast %69 : vector<1x8xf32> to vector<1x8xf32>
    %71 = vector.broadcast %70 : vector<1x8xf32> to vector<8x8xf32>
    %72 = vector.extract_strided_slice %67 {offsets = [1, 0, 0], sizes = [1, 1, 8], strides = [1, 1, 1]} : vector<9x1x8xf32> to vector<1x1x8xf32>
    %73 = vector.shape_cast %72 : vector<1x1x8xf32> to vector<1x8xf32>
    %74 = vector.shape_cast %73 : vector<1x8xf32> to vector<1x8xf32>
    %75 = vector.broadcast %74 : vector<1x8xf32> to vector<8x8xf32>
    %76 = vector.extract_strided_slice %67 {offsets = [2, 0, 0], sizes = [1, 1, 8], strides = [1, 1, 1]} : vector<9x1x8xf32> to vector<1x1x8xf32>
    %77 = vector.shape_cast %76 : vector<1x1x8xf32> to vector<1x8xf32>
    %78 = vector.shape_cast %77 : vector<1x8xf32> to vector<1x8xf32>
    %79 = vector.broadcast %78 : vector<1x8xf32> to vector<8x8xf32>
    %80 = vector.extract_strided_slice %67 {offsets = [3, 0, 0], sizes = [1, 1, 8], strides = [1, 1, 1]} : vector<9x1x8xf32> to vector<1x1x8xf32>
    %81 = vector.shape_cast %80 : vector<1x1x8xf32> to vector<1x8xf32>
    %82 = vector.shape_cast %81 : vector<1x8xf32> to vector<1x8xf32>
    %83 = vector.broadcast %82 : vector<1x8xf32> to vector<8x8xf32>
    %84 = vector.extract_strided_slice %67 {offsets = [4, 0, 0], sizes = [1, 1, 8], strides = [1, 1, 1]} : vector<9x1x8xf32> to vector<1x1x8xf32>
    %85 = vector.shape_cast %84 : vector<1x1x8xf32> to vector<1x8xf32>
    %86 = vector.shape_cast %85 : vector<1x8xf32> to vector<1x8xf32>
    %87 = vector.broadcast %86 : vector<1x8xf32> to vector<8x8xf32>
    %88 = vector.extract_strided_slice %67 {offsets = [5, 0, 0], sizes = [1, 1, 8], strides = [1, 1, 1]} : vector<9x1x8xf32> to vector<1x1x8xf32>
    %89 = vector.shape_cast %88 : vector<1x1x8xf32> to vector<1x8xf32>
    %90 = vector.shape_cast %89 : vector<1x8xf32> to vector<1x8xf32>
    %91 = vector.broadcast %90 : vector<1x8xf32> to vector<8x8xf32>
    %92 = vector.extract_strided_slice %67 {offsets = [6, 0, 0], sizes = [1, 1, 8], strides = [1, 1, 1]} : vector<9x1x8xf32> to vector<1x1x8xf32>
    %93 = vector.shape_cast %92 : vector<1x1x8xf32> to vector<1x8xf32>
    %94 = vector.shape_cast %93 : vector<1x8xf32> to vector<1x8xf32>
    %95 = vector.broadcast %94 : vector<1x8xf32> to vector<8x8xf32>
    %96 = vector.extract_strided_slice %67 {offsets = [7, 0, 0], sizes = [1, 1, 8], strides = [1, 1, 1]} : vector<9x1x8xf32> to vector<1x1x8xf32>
    %97 = vector.shape_cast %96 : vector<1x1x8xf32> to vector<1x8xf32>
    %98 = vector.shape_cast %97 : vector<1x8xf32> to vector<1x8xf32>
    %99 = vector.broadcast %98 : vector<1x8xf32> to vector<8x8xf32>
    %100 = vector.extract_strided_slice %67 {offsets = [8, 0, 0], sizes = [1, 1, 8], strides = [1, 1, 1]} : vector<9x1x8xf32> to vector<1x1x8xf32>
    %101 = vector.shape_cast %100 : vector<1x1x8xf32> to vector<1x8xf32>
    %102 = vector.shape_cast %101 : vector<1x8xf32> to vector<1x8xf32>
    %103 = vector.broadcast %102 : vector<1x8xf32> to vector<8x8xf32>
    %c0_26 = arith.constant 0 : index
    %c0_27 = arith.constant 0 : index
    %c0_28 = arith.constant 0 : index
    %104 = vector.load %arg7[%c0_26, %c0_27, %c0_28] : memref<1x1x8xf32, #tpu.memory_space<vmem>>, vector<1x1x8xf32>
    %cst_29 = arith.constant 0.000000e+00 : f32
    %105 = vector.broadcast %cst_29 : f32 to vector<8x8x8xf32>
    %c1_i32 = arith.constant 1 : i32
    %106 = tpu.dynamic_rotate %63 by %c1_i32 dim 1 : vector<8x8x8xf32>, i32 -> vector<8x8x8xf32>
    %cst_30 = arith.constant 0.000000e+00 : f32
    %107 = vector.shape_cast %66 : vector<1x8x8xi1> to vector<1x8x8xi1>
    %108 = vector.broadcast %107 : vector<1x8x8xi1> to vector<8x8x8xi1>
    %109 = vector.broadcast %cst_30 : f32 to vector<8x8x8xf32>
    %110 = arith.select %108, %106, %109 : vector<8x8x8xi1>, vector<8x8x8xf32>
    %111 = vector.shape_cast %71 : vector<8x8xf32> to vector<1x8x8xf32>
    %112 = vector.broadcast %111 : vector<1x8x8xf32> to vector<8x8x8xf32>
    %113 = arith.mulf %110, %112 : vector<8x8x8xf32>
    %114 = arith.addf %105, %113 : vector<8x8x8xf32>
    %115 = vector.shape_cast %75 : vector<8x8xf32> to vector<1x8x8xf32>
    %116 = vector.broadcast %115 : vector<1x8x8xf32> to vector<8x8x8xf32>
    %117 = arith.mulf %61, %116 : vector<8x8x8xf32>
    %118 = arith.addf %114, %117 : vector<8x8x8xf32>
    %119 = vector.shape_cast %79 : vector<8x8xf32> to vector<1x8x8xf32>
    %120 = vector.broadcast %119 : vector<1x8x8xf32> to vector<8x8x8xf32>
    %121 = arith.mulf %63, %120 : vector<8x8x8xf32>
    %122 = arith.addf %118, %121 : vector<8x8x8xf32>
    %c1_i32_31 = arith.constant 1 : i32
    %123 = tpu.dynamic_rotate %57 by %c1_i32_31 dim 1 : vector<8x8x8xf32>, i32 -> vector<8x8x8xf32>
    %cst_32 = arith.constant 0.000000e+00 : f32
    %124 = vector.shape_cast %66 : vector<1x8x8xi1> to vector<1x8x8xi1>
    %125 = vector.broadcast %124 : vector<1x8x8xi1> to vector<8x8x8xi1>
    %126 = vector.broadcast %cst_32 : f32 to vector<8x8x8xf32>
    %127 = arith.select %125, %123, %126 : vector<8x8x8xi1>, vector<8x8x8xf32>
    %128 = vector.shape_cast %83 : vector<8x8xf32> to vector<1x8x8xf32>
    %129 = vector.broadcast %128 : vector<1x8x8xf32> to vector<8x8x8xf32>
    %130 = arith.mulf %127, %129 : vector<8x8x8xf32>
    %131 = arith.addf %122, %130 : vector<8x8x8xf32>
    %132 = vector.shape_cast %87 : vector<8x8xf32> to vector<1x8x8xf32>
    %133 = vector.broadcast %132 : vector<1x8x8xf32> to vector<8x8x8xf32>
    %134 = arith.mulf %53, %133 : vector<8x8x8xf32>
    %135 = arith.addf %131, %134 : vector<8x8x8xf32>
    %136 = vector.shape_cast %91 : vector<8x8xf32> to vector<1x8x8xf32>
    %137 = vector.broadcast %136 : vector<1x8x8xf32> to vector<8x8x8xf32>
    %138 = arith.mulf %57, %137 : vector<8x8x8xf32>
    %139 = arith.addf %135, %138 : vector<8x8x8xf32>
    %c1_i32_33 = arith.constant 1 : i32
    %140 = tpu.dynamic_rotate %59 by %c1_i32_33 dim 1 : vector<8x8x8xf32>, i32 -> vector<8x8x8xf32>
    %cst_34 = arith.constant 0.000000e+00 : f32
    %141 = vector.shape_cast %66 : vector<1x8x8xi1> to vector<1x8x8xi1>
    %142 = vector.broadcast %141 : vector<1x8x8xi1> to vector<8x8x8xi1>
    %143 = vector.broadcast %cst_34 : f32 to vector<8x8x8xf32>
    %144 = arith.select %142, %140, %143 : vector<8x8x8xi1>, vector<8x8x8xf32>
    %145 = vector.shape_cast %95 : vector<8x8xf32> to vector<1x8x8xf32>
    %146 = vector.broadcast %145 : vector<1x8x8xf32> to vector<8x8x8xf32>
    %147 = arith.mulf %144, %146 : vector<8x8x8xf32>
    %148 = arith.addf %139, %147 : vector<8x8x8xf32>
    %149 = vector.shape_cast %99 : vector<8x8xf32> to vector<1x8x8xf32>
    %150 = vector.broadcast %149 : vector<1x8x8xf32> to vector<8x8x8xf32>
    %151 = arith.mulf %55, %150 : vector<8x8x8xf32>
    %152 = arith.addf %148, %151 : vector<8x8x8xf32>
    %153 = vector.shape_cast %103 : vector<8x8xf32> to vector<1x8x8xf32>
    %154 = vector.broadcast %153 : vector<1x8x8xf32> to vector<8x8x8xf32>
    %155 = arith.mulf %59, %154 : vector<8x8x8xf32>
    %156 = arith.addf %152, %155 : vector<8x8x8xf32>
    %157 = vector.broadcast %104 : vector<1x1x8xf32> to vector<8x8x8xf32>
    %158 = arith.addf %156, %157 : vector<8x8x8xf32>
    %159 = arith.mulf %158, %158 : vector<8x8x8xf32>
    %160 = arith.mulf %158, %159 : vector<8x8x8xf32>
    %cst_35 = arith.constant 4.471500e-02 : f32
    %161 = vector.broadcast %cst_35 : f32 to vector<8x8x8xf32>
    %162 = arith.mulf %161, %160 : vector<8x8x8xf32>
    %163 = arith.addf %158, %162 : vector<8x8x8xf32>
    %cst_36 = arith.constant 0.797884583 : f32
    %164 = vector.broadcast %cst_36 : f32 to vector<8x8x8xf32>
    %165 = arith.mulf %164, %163 : vector<8x8x8xf32>
    %166 = math.tanh %165 : vector<8x8x8xf32>
    %cst_37 = arith.constant 1.000000e+00 : f32
    %167 = vector.broadcast %cst_37 : f32 to vector<8x8x8xf32>
    %168 = arith.addf %167, %166 : vector<8x8x8xf32>
    %cst_38 = arith.constant 5.000000e-01 : f32
    %169 = vector.broadcast %cst_38 : f32 to vector<8x8x8xf32>
    %170 = arith.mulf %169, %168 : vector<8x8x8xf32>
    %171 = arith.mulf %158, %170 : vector<8x8x8xf32>
    %c0_39 = arith.constant 0 : index
    %c0_40 = arith.constant 0 : index
    %172 = vector.load %arg8[%c0_39, %c0_40] : memref<8x8xf32, #tpu.memory_space<vmem>>, vector<8x8xf32>
    %173 = vector.shape_cast %171 : vector<8x8x8xf32> to vector<64x8xf32>
    %cst_41 = arith.constant dense<0.000000e+00> : vector<64x8xf32>
    %174 = tpu.matmul %173, %172, %cst_41 {dimension_numbers = #tpu.dot_dimension_numbers<[1], [0], [0], [1], [0, 0, 1, 1], [], []>} : vector<64x8xf32>, vector<8x8xf32>, vector<64x8xf32> -> vector<64x8xf32>
    %c0_42 = arith.constant 0 : index
    %c0_43 = arith.constant 0 : index
    %175 = vector.load %arg9[%c0_42, %c0_43] : memref<1x8xf32, #tpu.memory_space<vmem>>, vector<1x8xf32>
    %176 = vector.broadcast %175 : vector<1x8xf32> to vector<64x8xf32>
    %177 = arith.addf %174, %176 : vector<64x8xf32>
    %178 = vector.shape_cast %177 : vector<64x8xf32> to vector<8x8x8xf32>
    %c0_44 = arith.constant 0 : index
    %c0_45 = arith.constant 0 : index
    %c0_46 = arith.constant 0 : index
    %c0_47 = arith.constant 0 : index
    %179 = vector.load %arg10[%c0_44, %c0_45, %c0_46, %c0_47] : memref<1x8x8x8xf32, #tpu.memory_space<vmem>>, vector<1x8x8x8xf32>
    %180 = vector.shape_cast %179 : vector<1x8x8x8xf32> to vector<8x8x8xf32>
    %181 = vector.shape_cast %178 : vector<8x8x8xf32> to vector<1x8x8x8xf32>
    tpu.vector_store %arg10[%c0_44, %c0_45, %c0_46, %c0_47], %181 {strides = array<i32>} : memref<1x8x8x8xf32, #tpu.memory_space<vmem>>, vector<1x8x8x8xf32>,
    return
  }
  func.func @transform_0(%arg0: i32, %arg1: i32) -> (i32, i32, i32, i32) {
    %c0_i32 = arith.constant 0 : i32
    %c0_i32_0 = arith.constant 0 : i32
    %c0_i32_1 = arith.constant 0 : i32
    return %arg0, %arg1, %c0_i32, %c0_i32_0 : i32, i32, i32, i32
  }
  func.func @transform_1(%arg0: i32, %arg1: i32) -> (i32, i32, i32, i32) {
    %c16_i32 = arith.constant 16 : i32
    %0 = arith.muli %c16_i32, %arg1 : i32
    %c1_i32 = arith.constant 1 : i32
    %1 = arith.subi %0, %c1_i32 : i32
    %c0_i32 = arith.constant 0 : i32
    %2 = arith.maxsi %1, %c0_i32 : i32
    %c0_i32_0 = arith.constant 0 : i32
    %c0_i32_1 = arith.constant 0 : i32
    %c0_i32_2 = arith.constant 0 : i32
    return %arg0, %2, %c0_i32_0, %c0_i32_1 : i32, i32, i32, i32
  }
  func.func @transform_2(%arg0: i32, %arg1: i32) -> (i32, i32) {
    %c0_i32 = arith.constant 0 : i32
    %c0_i32_0 = arith.constant 0 : i32
    %c0_i32_1 = arith.constant 0 : i32
    return %c0_i32, %c0_i32_0 : i32, i32
  }
  func.func @transform_3(%arg0: i32, %arg1: i32) -> (i32, i32) {
    %c0_i32 = arith.constant 0 : i32
    %c0_i32_0 = arith.constant 0 : i32
    %c0_i32_1 = arith.constant 0 : i32
    return %c0_i32, %c0_i32_0 : i32, i32
  }
  func.func @transform_4(%arg0: i32, %arg1: i32) -> (i32, i32, i32) {
    %c0_i32 = arith.constant 0 : i32
    %c0_i32_0 = arith.constant 0 : i32
    %c0_i32_1 = arith.constant 0 : i32
    %c0_i32_2 = arith.constant 0 : i32
    return %c0_i32, %c0_i32_0, %c0_i32_1 : i32, i32, i32
  }
  func.func @transform_5(%arg0: i32, %arg1: i32) -> (i32, i32, i32) {
    %c0_i32 = arith.constant 0 : i32
    %c0_i32_0 = arith.constant 0 : i32
    %c0_i32_1 = arith.constant 0 : i32
    %c0_i32_2 = arith.constant 0 : i32
    return %c0_i32, %c0_i32_0, %c0_i32_1 : i32, i32, i32
  }
  func.func @transform_6(%arg0: i32, %arg1: i32) -> (i32, i32) {
    %c0_i32 = arith.constant 0 : i32
    %c0_i32_0 = arith.constant 0 : i32
    %c0_i32_1 = arith.constant 0 : i32
    return %c0_i32, %c0_i32_0 : i32, i32
  }
  func.func @transform_7(%arg0: i32, %arg1: i32) -> (i32, i32) {
    %c0_i32 = arith.constant 0 : i32
    %c0_i32_0 = arith.constant 0 : i32
    %c0_i32_1 = arith.constant 0 : i32
    return %c0_i32, %c0_i32_0 : i32, i32
  }
  func.func @transform_8(%arg0: i32, %arg1: i32) -> (i32, i32, i32, i32) {
    %c0_i32 = arith.constant 0 : i32
    %c0_i32_0 = arith.constant 0 : i32
    %c0_i32_1 = arith.constant 0 : i32
    return %arg0, %arg1, %c0_i32, %c0_i32_0 : i32, i32, i32, i32
  }
}

</mosaic_0001>

<llo_original>
// kernel: _lambda_.1
$region0: #{_lambda_.1}
  #allocation0 [shape = 'u32[]', space=smem, size = 0x4, offset = 0x4, fixed_abs, tag = 'smem constant byte address 0x4 - core index']
  #allocation1 [shape = 'u32[144,128]{1,0:T(1,128)}', space=vmem, size = 0x12000, scoped, tag = 'internal scratch']
  %s0 = inlined_call_operand.vmem [shape: f32[2,16,8,8], index: 0, kind: input, shape index: {}, may-alias: {0,1}]
  %s1 = inlined_call_operand.vmem [shape: f32[2,16,8,8], index: 1, kind: input, shape index: {}, may-alias: {0,1}]
  %s2 = inlined_call_operand.vmem [shape: f32[8,16], index: 2, kind: input, shape index: {}]
  %s3 = inlined_call_operand.vmem [shape: f32[1,16], index: 3, kind: input, shape index: {}]
  %s4 = inlined_call_operand.vmem [shape: f32[9,1,8], index: 4, kind: input, shape index: {}]
  %s5 = inlined_call_operand.vmem [shape: f32[1,1,8], index: 5, kind: input, shape index: {}]
  %s6 = inlined_call_operand.vmem [shape: f32[8,8], index: 6, kind: input, shape index: {}]
  %s7 = inlined_call_operand.vmem [shape: f32[1,8], index: 7, kind: input, shape index: {}]
  %s8 = inlined_call_operand.vmem [shape: f32[2,8,8,8], index: 8, kind: output, shape index: {}]
  %s9 = sld [smem:[#allocation0]]
  $region65: #{_lambda_.1} parent=0
    _
  %s11 = ssub.s32 1, %s9
  %s12 = scalar_select 0, %s11, %s9
  loop: start=0, step=1, limit=4
  $region2: #{_lambda_.1} parent=0 // loop_pre_header
    _
  $region3: #{_lambda_.1} parent=0 // loop_header
    %s14 = sphi 0, %s18
    %p15 = scmp.ge.s32.totalorder %s14, 4
    %s21 = sphi 0, %s33
    %s22 = sphi 0, %s29
    %s23 = sphi 0, %s21
    %s24 = sphi 0, %s22
    %s25 = sphi 0, %s23
    %s26 = sphi 0, %s24
    %s38 = sphi 0, %s40
    %s41 = sphi 0, %s38
    %s42 = sphi 0, %s41
    %s58 = sphi 0, %s42
    %s74 = sphi 0, %s76
    %s77 = sphi 0, %s74
    %s78 = sphi 0, %s77
    %s94 = sphi 0, %s78
    %s98 = sphi 0, %s98
    %s100 = sphi 0, %s98
    %s101 = sphi 0, %s100
    %s115 = sphi 0, %s101
    %s119 = sphi 0, %s119
    %s121 = sphi 0, %s119
    %s122 = sphi 0, %s121
    %s136 = sphi 0, %s122
    %s140 = sphi 0, %s140
    %s142 = sphi 0, %s140
    %s143 = sphi 0, %s142
    %s157 = sphi 0, %s143
    %s161 = sphi 0, %s161
    %s163 = sphi 0, %s161
    %s164 = sphi 0, %s163
    %s178 = sphi 0, %s164
    %s182 = sphi 0, %s182
    %s184 = sphi 0, %s182
    %s185 = sphi 0, %s184
    %s199 = sphi 0, %s185
    %s203 = sphi 0, %s203
    %s205 = sphi 0, %s203
    %s206 = sphi 0, %s205
    %s220 = sphi 0, %s206
    %s228 = sphi 0, %s230
    %s231 = sphi 0, %s228
    %s232 = sphi 0, %s231
    %s248 = sphi 0, %s232
  $region4: #{_lambda_.1} parent=0 // loop_header_branch
    %17 = sbr.rel (%p15) target = $region8
  $region5: #{_lambda_.1} parent=0 // loop_body
    %s19 = ssub.s32 %s14, 1
    %s20 = ssub.s32 %s14, 2
    %s27 = sadd.s32 1, %s22
    %p28 = scmp.ge.s32.totalorder %s27, 1
    %s29 = scalar_select %p28, 0, %s27
    %s30 = sadd.s32 1, %s21
    %s31 = scalar_select %p28, %s30, %s21
    %p32 = scmp.ge.s32.totalorder %s31, 2
    %s33 = scalar_select %p32, 0, %s31
    %s34 = ssub.s32 %s21, %s33
    %s35 = ssub.s32 %s22, %s29
    %s36 = sor.u32 %s34, %s35
    %p37 = scmp.eq.s32.totalorder %s36, 0
    %s39 = sadd.s32 %s38, 1
    %s40 = scalar_select %p37, %s38, %s39
    %p43 = pneg %p37
    %p44 = scmp.eq.s32.totalorder %s14, 1
    %p45 = por %p43, %p44
    %p46 = scmp.ne.s32.totalorder %s38, %s41
    %p47 = scmp.eq.s32.totalorder %s14, 0
    %p48 = por %p46, %p47
    %p49 = scmp.ne.s32.totalorder %s38, %s41
    %p50 = scmp.eq.s32.totalorder %s19, 1
    %p51 = por %p49, %p50
    %p52 = scmp.ne.s32.totalorder %s41, %s42
    %p53 = scmp.eq.s32.totalorder %s19, 0
    %p54 = por %p52, %p53
    %p55 = scmp.ne.s32.totalorder %s41, %s42
    %p56 = scmp.eq.s32.totalorder %s20, 1
    %p57 = por %p55, %p56
    %p59 = scmp.ne.s32.totalorder %s42, %s58
    %p60 = scmp.eq.s32.totalorder %s20, 0
    %p61 = por %p59, %p60
    %s62 = smul.u32 %s22, 16
    %s63 = ssub.s32 %s62, 1
    %p64 = scmp.gt.s32.totalorder %s63, 0
    %s65 = scalar_select %p64, %s63, 0
    %s66 = smul.u32 %s29, 16
    %s67 = ssub.s32 %s66, 1
    %p68 = scmp.gt.s32.totalorder %s67, 0
    %s69 = scalar_select %p68, %s67, 0
    %s70 = ssub.s32 %s21, %s33
    %s71 = ssub.s32 %s65, %s69
    %s72 = sor.u32 %s70, %s71
    %p73 = scmp.eq.s32.totalorder %s72, 0
    %s75 = sadd.s32 %s74, 1
    %s76 = scalar_select %p73, %s74, %s75
    %p79 = pneg %p73
    %p80 = scmp.eq.s32.totalorder %s14, 1
    %p81 = por %p79, %p80
    %p82 = scmp.ne.s32.totalorder %s74, %s77
    %p83 = scmp.eq.s32.totalorder %s14, 0
    %p84 = por %p82, %p83
    %p85 = scmp.ne.s32.totalorder %s74, %s77
    %p86 = scmp.eq.s32.totalorder %s19, 1
    %p87 = por %p85, %p86
    %p88 = scmp.ne.s32.totalorder %s77, %s78
    %p89 = scmp.eq.s32.totalorder %s19, 0
    %p90 = por %p88, %p89
    %p91 = scmp.ne.s32.totalorder %s77, %s78
    %p92 = scmp.eq.s32.totalorder %s20, 1
    %p93 = por %p91, %p92
    %p95 = scmp.ne.s32.totalorder %s78, %s94
    %p96 = scmp.eq.s32.totalorder %s20, 0
    %p97 = por %p95, %p96
    %s99 = sadd.s32 %s98, 1
    %p102 = scmp.eq.s32.totalorder %s14, 1
    %p103 = scmp.ne.s32.totalorder %s98, %s100
    %p104 = scmp.eq.s32.totalorder %s14, 0
    %p105 = por %p103, %p104
    %p106 = scmp.ne.s32.totalorder %s98, %s100
    %p107 = scmp.eq.s32.totalorder %s19, 1
    %p108 = por %p106, %p107
    %p109 = scmp.ne.s32.totalorder %s100, %s101
    %p110 = scmp.eq.s32.totalorder %s19, 0
    %p111 = por %p109, %p110
    %p112 = scmp.ne.s32.totalorder %s100, %s101
    %p113 = scmp.eq.s32.totalorder %s20, 1
    %p114 = por %p112, %p113
    %p116 = scmp.ne.s32.totalorder %s101, %s115
    %p117 = scmp.eq.s32.totalorder %s20, 0
    %p118 = por %p116, %p117
    %s120 = sadd.s32 %s119, 1
    %p123 = scmp.eq.s32.totalorder %s14, 1
    %p124 = scmp.ne.s32.totalorder %s119, %s121
    %p125 = scmp.eq.s32.totalorder %s14, 0
    %p126 = por %p124, %p125
    %p127 = scmp.ne.s32.totalorder %s119, %s121
    %p128 = scmp.eq.s32.totalorder %s19, 1
    %p129 = por %p127, %p128
    %p130 = scmp.ne.s32.totalorder %s121, %s122
    %p131 = scmp.eq.s32.totalorder %s19, 0
    %p132 = por %p130, %p131
    %p133 = scmp.ne.s32.totalorder %s121, %s122
    %p134 = scmp.eq.s32.totalorder %s20, 1
    %p135 = por %p133, %p134
    %p137 = scmp.ne.s32.totalorder %s122, %s136
    %p138 = scmp.eq.s32.totalorder %s20, 0
    %p139 = por %p137, %p138
    %s141 = sadd.s32 %s140, 1
    %p144 = scmp.eq.s32.totalorder %s14, 1
    %p145 = scmp.ne.s32.totalorder %s140, %s142
    %p146 = scmp.eq.s32.totalorder %s14, 0
    %p147 = por %p145, %p146
    %p148 = scmp.ne.s32.totalorder %s140, %s142
    %p149 = scmp.eq.s32.totalorder %s19, 1
    %p150 = por %p148, %p149
    %p151 = scmp.ne.s32.totalorder %s142, %s143
    %p152 = scmp.eq.s32.totalorder %s19, 0
    %p153 = por %p151, %p152
    %p154 = scmp.ne.s32.totalorder %s142, %s143
    %p155 = scmp.eq.s32.totalorder %s20, 1
    %p156 = por %p154, %p155
    %p158 = scmp.ne.s32.totalorder %s143, %s157
    %p159 = scmp.eq.s32.totalorder %s20, 0
    %p160 = por %p158, %p159
    %s162 = sadd.s32 %s161, 1
    %p165 = scmp.eq.s32.totalorder %s14, 1
    %p166 = scmp.ne.s32.totalorder %s161, %s163
    %p167 = scmp.eq.s32.totalorder %s14, 0
    %p168 = por %p166, %p167
    %p169 = scmp.ne.s32.totalorder %s161, %s163
    %p170 = scmp.eq.s32.totalorder %s19, 1
    %p171 = por %p169, %p170
    %p172 = scmp.ne.s32.totalorder %s163, %s164
    %p173 = scmp.eq.s32.totalorder %s19, 0
    %p174 = por %p172, %p173
    %p175 = scmp.ne.s32.totalorder %s163, %s164
    %p176 = scmp.eq.s32.totalorder %s20, 1
    %p177 = por %p175, %p176
    %p179 = scmp.ne.s32.totalorder %s164, %s178
    %p180 = scmp.eq.s32.totalorder %s20, 0
    %p181 = por %p179, %p180
    %s183 = sadd.s32 %s182, 1
    %p186 = scmp.eq.s32.totalorder %s14, 1
    %p187 = scmp.ne.s32.totalorder %s182, %s184
    %p188 = scmp.eq.s32.totalorder %s14, 0
    %p189 = por %p187, %p188
    %p190 = scmp.ne.s32.totalorder %s182, %s184
    %p191 = scmp.eq.s32.totalorder %s19, 1
    %p192 = por %p190, %p191
    %p193 = scmp.ne.s32.totalorder %s184, %s185
    %p194 = scmp.eq.s32.totalorder %s19, 0
    %p195 = por %p193, %p194
    %p196 = scmp.ne.s32.totalorder %s184, %s185
    %p197 = scmp.eq.s32.totalorder %s20, 1
    %p198 = por %p196, %p197
    %p200 = scmp.ne.s32.totalorder %s185, %s199
    %p201 = scmp.eq.s32.totalorder %s20, 0
    %p202 = por %p200, %p201
    %s204 = sadd.s32 %s203, 1
    %p207 = scmp.eq.s32.totalorder %s14, 1
    %p208 = scmp.ne.s32.totalorder %s203, %s205
    %p209 = scmp.eq.s32.totalorder %s14, 0
    %p210 = por %p208, %p209
    %p211 = scmp.ne.s32.totalorder %s203, %s205
    %p212 = scmp.eq.s32.totalorder %s19, 1
    %p213 = por %p211, %p212
    %p214 = scmp.ne.s32.totalorder %s205, %s206
    %p215 = scmp.eq.s32.totalorder %s19, 0
    %p216 = por %p214, %p215
    %p217 = scmp.ne.s32.totalorder %s205, %s206
    %p218 = scmp.eq.s32.totalorder %s20, 1
    %p219 = por %p217, %p218
    %p221 = scmp.ne.s32.totalorder %s206, %s220
    %p222 = scmp.eq.s32.totalorder %s20, 0
    %p223 = por %p221, %p222
    %s224 = ssub.s32 %s21, %s33
    %s225 = ssub.s32 %s22, %s29
    %s226 = sor.u32 %s224, %s225
    %p227 = scmp.eq.s32.totalorder %s226, 0
    %s229 = sadd.s32 %s228, 1
    %s230 = scalar_select %p227, %s228, %s229
    %p233 = pneg %p227
    %p234 = scmp.eq.s32.totalorder %s14, 1
    %p235 = por %p233, %p234
    %p236 = scmp.ne.s32.totalorder %s228, %s231
    %p237 = scmp.eq.s32.totalorder %s14, 0
    %p238 = por %p236, %p237
    %p239 = scmp.ne.s32.totalorder %s228, %s231
    %p240 = scmp.eq.s32.totalorder %s19, 1
    %p241 = por %p239, %p240
    %p242 = scmp.ne.s32.totalorder %s231, %s232
    %p243 = scmp.eq.s32.totalorder %s19, 0
    %p244 = por %p242, %p243
    %p245 = scmp.ne.s32.totalorder %s231, %s232
    %p246 = scmp.eq.s32.totalorder %s20, 1
    %p247 = por %p245, %p246
    %p249 = scmp.ne.s32.totalorder %s232, %s248
    %p250 = scmp.eq.s32.totalorder %s20, 0
    %p251 = por %p249, %p250
    %p252 = scmp.le.s32.totalorder 1, %s14
    %p253 = scmp.lt.s32.totalorder %s14, 3
    %p254 = pnand %p252, %p253
    %p255 = pneg %p254
    // Predicated region
    $region9: #{_lambda_.1} parent=5 // pred_check
      _
    $region10: #{_lambda_.1} parent=5 // pred_check_branch
      %257 = sbr.rel (%p254) target = $region12
    $region11: #{_lambda_.1} parent=5 // pred_region
      %s258 = ssub.s32 %s14, 1
      // Predicated region
      $region13: #{_lambda_.1} parent=11 // pred_check
        %p259 = pneg %p111
      $region14: #{_lambda_.1} parent=11 // pred_check_branch
        %261 = sbr.rel (%p259) target = $region16
      $region15: #{_lambda_.1} parent=11 // pred_region
        _
      $region16: #{_lambda_.1} parent=11 // pred_fallthru
        _
      // Predicated region
      $region17: #{_lambda_.1} parent=11 // pred_check
        %p262 = pneg %p132
      $region18: #{_lambda_.1} parent=11 // pred_check_branch
        %264 = sbr.rel (%p262) target = $region20
      $region19: #{_lambda_.1} parent=11 // pred_region
        _
      $region20: #{_lambda_.1} parent=11 // pred_fallthru
        _
      // Predicated region
      $region21: #{_lambda_.1} parent=11 // pred_check
        %p265 = pneg %p153
      $region22: #{_lambda_.1} parent=11 // pred_check_branch
        %267 = sbr.rel (%p265) target = $region24
      $region23: #{_lambda_.1} parent=11 // pred_region
        _
      $region24: #{_lambda_.1} parent=11 // pred_fallthru
        _
      // Predicated region
      $region25: #{_lambda_.1} parent=11 // pred_check
        %p268 = pneg %p174
      $region26: #{_lambda_.1} parent=11 // pred_check_branch
        %270 = sbr.rel (%p268) target = $region28
      $region27: #{_lambda_.1} parent=11 // pred_region
        _
      $region28: #{_lambda_.1} parent=11 // pred_fallthru
        _
      // Predicated region
      $region29: #{_lambda_.1} parent=11 // pred_check
        %p271 = pneg %p195
      $region30: #{_lambda_.1} parent=11 // pred_check_branch
        %273 = sbr.rel (%p271) target = $region32
      $region31: #{_lambda_.1} parent=11 // pred_region
        _
      $region32: #{_lambda_.1} parent=11 // pred_fallthru
        _
      // Predicated region
      $region33: #{_lambda_.1} parent=11 // pred_check
        %p274 = pneg %p216
      $region34: #{_lambda_.1} parent=11 // pred_check_branch
        %276 = sbr.rel (%p274) target = $region36
      $region35: #{_lambda_.1} parent=11 // pred_region
        _
      $region36: #{_lambda_.1} parent=11 // pred_fallthru
        _
    $region12: #{_lambda_.1} parent=5 // pred_fallthru
      _
    %p277 = scmp.lt.s32.totalorder %s14, 2
    // Predicated region
    $region37: #{_lambda_.1} parent=5 // pred_check
      %p278 = pneg %p277
    $region38: #{_lambda_.1} parent=5 // pred_check_branch
      %280 = sbr.rel (%p278) target = $region40
    $region39: #{_lambda_.1} parent=5 // pred_region
      // Predicated region
      $region41: #{_lambda_.1} parent=39 // pred_check
        %p281 = pneg %p48
      $region42: #{_lambda_.1} parent=39 // pred_check_branch
        %283 = sbr.rel (%p281) target = $region44
      $region43: #{_lambda_.1} parent=39 // pred_region
        %s284 = smul.u32 16, %s22
        %p285 = scmp.lt.s32.totalorder %s21, 1
        %s286 = scalar_select %p285, %s21, 1
        %p287 = scmp.lt.s32.totalorder %s284, 15
        %s288 = scalar_select %p287, %s284, 15
        %s289 = smul.addr %s286, 16
        %s290 = sadd.s32 %s288, %s289
        %s291 = smul.addr %s290, 8
        %s292 = scalar_lea.vmem %s0, %s291
        %s293 = smul.u32 16, %s22
      $region44: #{_lambda_.1} parent=39 // pred_fallthru
        _
      // Predicated region
      $region45: #{_lambda_.1} parent=39 // pred_check
        %p294 = pneg %p84
      $region46: #{_lambda_.1} parent=39 // pred_check_branch
        %296 = sbr.rel (%p294) target = $region48
      $region47: #{_lambda_.1} parent=39 // pred_region
        %s297 = smul.u32 %s22, 16
        %s298 = ssub.s32 %s297, 1
        %p299 = scmp.gt.s32.totalorder %s298, 0
        %s300 = scalar_select %p299, %s298, 0
        %p301 = scmp.lt.s32.totalorder %s21, 1
        %s302 = scalar_select %p301, %s21, 1
        %p303 = scmp.lt.s32.totalorder %s300, 15
        %s304 = scalar_select %p303, %s300, 15
        %s305 = smul.addr %s302, 16
        %s306 = sadd.s32 %s304, %s305
        %s307 = smul.addr %s306, 8
        %s308 = scalar_lea.vmem %s1, %s307
        %s309 = smul.u32 %s22, 16
        %s310 = ssub.s32 %s309, 1
        %p311 = scmp.gt.s32.totalorder %s310, 0
        %s312 = scalar_select %p311, %s310, 0
      $region48: #{_lambda_.1} parent=39 // pred_fallthru
        _
    $region40: #{_lambda_.1} parent=5 // pred_fallthru
      _
    %p313 = scmp.le.s32.totalorder 1, %s14
    %p314 = scmp.lt.s32.totalorder %s14, 3
    %p315 = pnand %p313, %p314
    %p316 = pneg %p315
    // Predicated region
    $region49: #{_lambda_.1} parent=5 // pred_check
      _
    $region50: #{_lambda_.1} parent=5 // pred_check_branch
      %318 = sbr.rel (%p315) target = $region52
    $region51: #{_lambda_.1} parent=5 // pred_region
      %s319 = ssub.s32 %s14, 1
      %s320 = smul.u32 16, %s24
      %p321 = scmp.lt.s32.totalorder %s23, 1
      %s322 = scalar_select %p321, %s23, 1
      %p323 = scmp.lt.s32.totalorder %s320, 15
      %s324 = scalar_select %p323, %s320, 15
      %s325 = smul.addr %s322, 16
      %s326 = sadd.s32 %s324, %s325
      %s327 = smul.addr %s326, 8
      %s328 = scalar_lea.vmem %s0, %s327
      %p329 = pneg %p54
      %p330 = pneg %p51
      %s331 = smul.u32 %s24, 16
      %s332 = ssub.s32 %s331, 1
      %p333 = scmp.gt.s32.totalorder %s332, 0
      %s334 = scalar_select %p333, %s332, 0
      %p335 = scmp.lt.s32.totalorder %s23, 1
      %s336 = scalar_select %p335, %s23, 1
      %p337 = scmp.lt.s32.totalorder %s334, 15
      %s338 = scalar_select %p337, %s334, 15
      %s339 = smul.addr %s336, 16
      %s340 = sadd.s32 %s338, %s339
      %s341 = smul.addr %s340, 8
      %s342 = scalar_lea.vmem %s1, %s341
      %p343 = pneg %p90
      %p344 = pneg %p87
      %p345 = pneg %p111
      %p346 = pneg %p108
      %p347 = pneg %p132
      %p348 = pneg %p129
      %p349 = pneg %p153
      %p350 = pneg %p150
      %p351 = pneg %p174
      %p352 = pneg %p171
      %p353 = pneg %p195
      %p354 = pneg %p192
      %p355 = pneg %p216
      %p356 = pneg %p213
      %p357 = pneg %p244
      %p358 = pneg %p241
      %s359 = smul.u32 8, %s24
      %p360 = scmp.lt.s32.totalorder %s23, 1
      %s361 = scalar_select %p360, %s23, 1
      %p362 = scmp.lt.s32.totalorder %s359, 7
      %s363 = scalar_select %p362, %s359, 7
      %s364 = smul.addr %s361, 8
      %s365 = sadd.s32 %s363, %s364
      %s366 = smul.addr %s365, 8
      %s367 = scalar_lea.vmem %s8, %s366
      %s368 = smul.u32 16, %s24
      %p369 = scmp.lt.s32.totalorder %s23, 1
      %s370 = scalar_select %p369, %s23, 1
      %p371 = scmp.lt.s32.totalorder %s368, 15
      %s372 = scalar_select %p371, %s368, 15
      %s373 = smul.addr %s370, 16
      %s374 = sadd.s32 %s372, %s373
      %s375 = smul.addr %s374, 8
      %s376 = scalar_lea.vmem %s0, %s375
      %s377 = smul.u32 16, %s24
      %s378 = smul.u32 %s24, 16
      %s379 = ssub.s32 %s378, 1
      %p380 = scmp.gt.s32.totalorder %s379, 0
      %s381 = scalar_select %p380, %s379, 0
      %p382 = scmp.lt.s32.totalorder %s23, 1
      %s383 = scalar_select %p382, %s23, 1
      %p384 = scmp.lt.s32.totalorder %s381, 15
      %s385 = scalar_select %p384, %s381, 15
      %s386 = smul.addr %s383, 16
      %s387 = sadd.s32 %s385, %s386
      %s388 = smul.addr %s387, 8
      %s389 = scalar_lea.vmem %s1, %s388
      %s390 = smul.u32 %s24, 16
      %s391 = ssub.s32 %s390, 1
      %p392 = scmp.gt.s32.totalorder %s391, 0
      %s393 = scalar_select %p392, %s391, 0
      %s394 = smul.u32 8, %s24
      %p395 = scmp.lt.s32.totalorder %s23, 1
      %s396 = scalar_select %p395, %s23, 1
      %p397 = scmp.lt.s32.totalorder %s394, 7
      %s398 = scalar_select %p397, %s394, 7
      %s399 = smul.addr %s396, 8
      %s400 = sadd.s32 %s398, %s399
      %s401 = smul.addr %s400, 8
      %s402 = scalar_lea.vmem %s8, %s401
      %s403 = smul.u32 8, %s24
      %v404 = vld [vmem:[%s2] sm:$0xff]
      %v405 = vld [vmem:[%s3] sm:$0x1]
      %v406 = vld [vmem:[%s376] sm:$0xff]
      %v407 = vld [vmem:[%s376 + $0x8] sm:$0xff]
      %v408 = vld [vmem:[%s376 + $0x10] sm:$0xff]
      %v409 = vld [vmem:[%s376 + $0x18] sm:$0xff]
      %v410 = vld [vmem:[%s376 + $0x20] sm:$0xff]
      %v411 = vld [vmem:[%s376 + $0x28] sm:$0xff]
      %v412 = vld [vmem:[%s376 + $0x30] sm:$0xff]
      %v413 = vld [vmem:[%s376 + $0x38] sm:$0xff]
      %v414 = vld [vmem:[%s376 + $0x40] sm:$0xff]
      %v415 = vld [vmem:[%s376 + $0x48] sm:$0xff]
      %v416 = vld [vmem:[%s376 + $0x50] sm:$0xff]
      %v417 = vld [vmem:[%s376 + $0x58] sm:$0xff]
      %v418 = vld [vmem:[%s376 + $0x60] sm:$0xff]
      %v419 = vld [vmem:[%s376 + $0x68] sm:$0xff]
      %v420 = vld [vmem:[%s376 + $0x70] sm:$0xff]
      %v421 = vld [vmem:[%s376 + $0x78] sm:$0xff]
      %v423 = vlaneseq
      %v424 = vshrl.u32 %v423, 7
      %v425 = vsub.s32 0, %v424
      %v426 = vrot.slane %v405, %v425
      %vm428 = vcmask 64512
      %v430 = vsel %vm428, %v406, 0
      %v433 = vsel %vm428, %v407, 0
      %v436 = vsel %vm428, %v408, 0
      %v439 = vsel %vm428, %v409, 0
      %v442 = vsel %vm428, %v410, 0
      %v445 = vsel %vm428, %v411, 0
      %v448 = vsel %vm428, %v412, 0
      %v451 = vsel %vm428, %v413, 0
      %v454 = vsel %vm428, %v414, 0
      %v457 = vsel %vm428, %v415, 0
      %v460 = vsel %vm428, %v416, 0
      %v463 = vsel %vm428, %v417, 0
      %v466 = vsel %vm428, %v418, 0
      %v469 = vsel %vm428, %v419, 0
      %v472 = vsel %vm428, %v420, 0
      %v475 = vsel %vm428, %v421, 0
      %477 = vmatprep.subr.mxu0 0.0
      %478 = vmatpush1.msra.mxu0 0.0
      %479 = vmatprep.subr.mxu0 0.0
      %480 = vmatpush1.msra.mxu0 0.0
      %481 = vmatprep.subr.mxu0 0.0
      %482 = vmatpush1.msra.mxu0 0.0
      %483 = vmatprep.subr.mxu0 0.0
      %484 = vmatpush1.msra.mxu0 0.0
      %485 = vmatprep.subr.mxu0 0.0
      %486 = vmatpush1.msra.mxu0 0.0
      %487 = vmatprep.subr.mxu0 0.0
      %488 = vmatpush1.msra.mxu0 0.0
      %489 = vmatprep.subr.mxu0 0.0
      %490 = vmatpush1.msra.mxu0 0.0
      %491 = vmatprep.subr.mxu0 0.0
      %492 = vmatpush1.msra.mxu0 0.0
      %493 = vmatprep.subr.mxu0 0.0
      %494 = vmatpush1.msra.mxu0 0.0
      %495 = vmatprep.subr.mxu0 0.0
      %496 = vmatpush1.msra.mxu0 0.0
      %497 = vmatprep.subr.mxu0 0.0
      %498 = vmatpush1.msra.mxu0 0.0
      %499 = vmatprep.subr.mxu0 0.0
      %500 = vmatpush1.msra.mxu0 0.0
      %501 = vmatprep.subr.mxu0 0.0
      %502 = vmatpush1.msra.mxu0 0.0
      %503 = vmatprep.subr.mxu0 0.0
      %504 = vmatpush1.msra.mxu0 0.0
      %505 = vmatprep.subr.mxu0 0.0
      %506 = vmatpush1.msra.mxu0 0.0
      %507 = vmatprep.subr.mxu0 0.0
      %508 = vmatpush1.msra.mxu0 %v404
      %509 = vmatprep.subr.mxu0 0.0
      %510 = vmatpush2.msra.mxu0 0.0
      %511 = vmatprep.subr.mxu0 0.0
      %512 = vmatpush2.msra.mxu0 0.0
      %513 = vmatprep.subr.mxu0 0.0
      %514 = vmatpush2.msra.mxu0 0.0
      %515 = vmatprep.subr.mxu0 0.0
      %516 = vmatpush2.msra.mxu0 0.0
      %517 = vmatprep.subr.mxu0 0.0
      %518 = vmatpush2.msra.mxu0 0.0
      %519 = vmatprep.subr.mxu0 0.0
      %520 = vmatpush2.msra.mxu0 0.0
      %521 = vmatprep.subr.mxu0 0.0
      %522 = vmatpush2.msra.mxu0 0.0
      %523 = vmatprep.subr.mxu0 0.0
      %524 = vmatpush2.msra.mxu0 0.0
      %525 = vmatprep.subr.mxu0 0.0
      %526 = vmatpush2.msra.mxu0 0.0
      %527 = vmatprep.subr.mxu0 0.0
      %528 = vmatpush2.msra.mxu0 0.0
      %529 = vmatprep.subr.mxu0 0.0
      %530 = vmatpush2.msra.mxu0 0.0
      %531 = vmatprep.subr.mxu0 0.0
      %532 = vmatpush2.msra.mxu0 0.0
      %533 = vmatprep.subr.mxu0 0.0
      %534 = vmatpush2.msra.mxu0 0.0
      %535 = vmatprep.subr.mxu0 0.0
      %536 = vmatpush2.msra.mxu0 0.0
      %537 = vmatprep.subr.mxu0 0.0
      %538 = vmatpush2.msra.mxu0 0.0
      %539 = vmatprep.subr.mxu0 0.0
      %540 = vmatpush2.msra.mxu0 0.0
      %541 = vmatprep.mubr.f32.mxu0 0.0
      %542 = vmatmul.mubr.f32.gmra.mxu0 %v430
      %v543 = vpop.f32.mrf.mxu0
      %v544 = vadd.f32 %v426, %v543
      %v545 = vpop.f32.mrf.mxu0
      %546 = vmatprep.mubr.f32.mxu0 0.0
      %547 = vmatmul.mubr.f32.gmra.mxu0 %v433
      %v548 = vpop.f32.mrf.mxu0
      %v549 = vadd.f32 %v426, %v548
      %v550 = vpop.f32.mrf.mxu0
      %551 = vmatprep.mubr.f32.mxu0 0.0
      %552 = vmatmul.mubr.f32.gmra.mxu0 %v436
      %v553 = vpop.f32.mrf.mxu0
      %v554 = vadd.f32 %v426, %v553
      %v555 = vpop.f32.mrf.mxu0
      %556 = vmatprep.mubr.f32.mxu0 0.0
      %557 = vmatmul.mubr.f32.gmra.mxu0 %v439
      %v558 = vpop.f32.mrf.mxu0
      %v559 = vadd.f32 %v426, %v558
      %v560 = vpop.f32.mrf.mxu0
      %561 = vmatprep.mubr.f32.mxu0 0.0
      %562 = vmatmul.mubr.f32.gmra.mxu0 %v442
      %v563 = vpop.f32.mrf.mxu0
      %v564 = vadd.f32 %v426, %v563
      %v565 = vpop.f32.mrf.mxu0
      %566 = vmatprep.mubr.f32.mxu0 0.0
      %567 = vmatmul.mubr.f32.gmra.mxu0 %v445
      %v568 = vpop.f32.mrf.mxu0
      %v569 = vadd.f32 %v426, %v568
      %v570 = vpop.f32.mrf.mxu0
      %571 = vmatprep.mubr.f32.mxu0 0.0
      %572 = vmatmul.mubr.f32.gmra.mxu0 %v448
      %v573 = vpop.f32.mrf.mxu0
      %v574 = vadd.f32 %v426, %v573
      %v575 = vpop.f32.mrf.mxu0
      %576 = vmatprep.mubr.f32.mxu0 0.0
      %577 = vmatmul.mubr.f32.gmra.mxu0 %v451
      %v578 = vpop.f32.mrf.mxu0
      %v579 = vadd.f32 %v426, %v578
      %v580 = vpop.f32.mrf.mxu0
      %581 = vmatprep.mubr.f32.mxu0 0.0
      %582 = vmatmul.mubr.f32.gmra.mxu0 %v454
      %v583 = vpop.f32.mrf.mxu0
      %v584 = vadd.f32 %v426, %v583
      %v585 = vpop.f32.mrf.mxu0
      %586 = vmatprep.mubr.f32.mxu0 0.0
      %587 = vmatmul.mubr.f32.gmra.mxu0 %v457
      %v588 = vpop.f32.mrf.mxu0
      %v589 = vadd.f32 %v426, %v588
      %v590 = vpop.f32.mrf.mxu0
      %591 = vmatprep.mubr.f32.mxu0 0.0
      %592 = vmatmul.mubr.f32.gmra.mxu0 %v460
      %v593 = vpop.f32.mrf.mxu0
      %v594 = vadd.f32 %v426, %v593
      %v595 = vpop.f32.mrf.mxu0
      %596 = vmatprep.mubr.f32.mxu0 0.0
      %597 = vmatmul.mubr.f32.gmra.mxu0 %v463
      %v598 = vpop.f32.mrf.mxu0
      %v599 = vadd.f32 %v426, %v598
      %v600 = vpop.f32.mrf.mxu0
      %601 = vmatprep.mubr.f32.mxu0 0.0
      %602 = vmatmul.mubr.f32.gmra.mxu0 %v466
      %v603 = vpop.f32.mrf.mxu0
      %v604 = vadd.f32 %v426, %v603
      %v605 = vpop.f32.mrf.mxu0
      %606 = vmatprep.mubr.f32.mxu0 0.0
      %607 = vmatmul.mubr.f32.gmra.mxu0 %v469
      %v608 = vpop.f32.mrf.mxu0
      %v609 = vadd.f32 %v426, %v608
      %v610 = vpop.f32.mrf.mxu0
      %611 = vmatprep.mubr.f32.mxu0 0.0
      %612 = vmatmul.mubr.f32.gmra.mxu0 %v472
      %v613 = vpop.f32.mrf.mxu0
      %v614 = vadd.f32 %v426, %v613
      %v615 = vpop.f32.mrf.mxu0
      %616 = vmatprep.mubr.f32.mxu0 0.0
      %617 = vmatmul.mubr.f32.gmra.mxu0 %v475
      %v618 = vpop.f32.mrf.mxu0
      %v619 = vadd.f32 %v426, %v618
      %v620 = vpop.f32.mrf.mxu0
      %621 = vdwg.mxu0
      %v622 = vmul.f32 %v544, %v544
      %v623 = vmul.f32 %v549, %v549
      %v624 = vmul.f32 %v554, %v554
      %v625 = vmul.f32 %v559, %v559
      %v626 = vmul.f32 %v564, %v564
      %v627 = vmul.f32 %v569, %v569
      %v628 = vmul.f32 %v574, %v574
      %v629 = vmul.f32 %v579, %v579
      %v630 = vmul.f32 %v584, %v584
      %v631 = vmul.f32 %v589, %v589
      %v632 = vmul.f32 %v594, %v594
      %v633 = vmul.f32 %v599, %v599
      %v634 = vmul.f32 %v604, %v604
      %v635 = vmul.f32 %v609, %v609
      %v636 = vmul.f32 %v614, %v614
      %v637 = vmul.f32 %v619, %v619
      %v638 = vmul.f32 %v544, %v622
      %v639 = vmul.f32 %v549, %v623
      %v640 = vmul.f32 %v554, %v624
      %v641 = vmul.f32 %v559, %v625
      %v642 = vmul.f32 %v564, %v626
      %v643 = vmul.f32 %v569, %v627
      %v644 = vmul.f32 %v574, %v628
      %v645 = vmul.f32 %v579, %v629
      %v646 = vmul.f32 %v584, %v630
      %v647 = vmul.f32 %v589, %v631
      %v648 = vmul.f32 %v594, %v632
      %v649 = vmul.f32 %v599, %v633
      %v650 = vmul.f32 %v604, %v634
      %v651 = vmul.f32 %v609, %v635
      %v652 = vmul.f32 %v614, %v636
      %v653 = vmul.f32 %v619, %v637
      %v654 = vmul.f32 %v638, 0.044715
      %v655 = vmul.f32 %v639, 0.044715
      %v656 = vmul.f32 %v640, 0.044715
      %v657 = vmul.f32 %v641, 0.044715
      %v658 = vmul.f32 %v642, 0.044715
      %v659 = vmul.f32 %v643, 0.044715
      %v660 = vmul.f32 %v644, 0.044715
      %v661 = vmul.f32 %v645, 0.044715
      %v662 = vmul.f32 %v646, 0.044715
      %v663 = vmul.f32 %v647, 0.044715
      %v664 = vmul.f32 %v648, 0.044715
      %v665 = vmul.f32 %v649, 0.044715
      %v666 = vmul.f32 %v650, 0.044715
      %v667 = vmul.f32 %v651, 0.044715
      %v668 = vmul.f32 %v652, 0.044715
      %v669 = vmul.f32 %v653, 0.044715
      %v670 = vadd.f32 %v544, %v654
      %v671 = vadd.f32 %v549, %v655
      %v672 = vadd.f32 %v554, %v656
      %v673 = vadd.f32 %v559, %v657
      %v674 = vadd.f32 %v564, %v658
      %v675 = vadd.f32 %v569, %v659
      %v676 = vadd.f32 %v574, %v660
      %v677 = vadd.f32 %v579, %v661
      %v678 = vadd.f32 %v584, %v662
      %v679 = vadd.f32 %v589, %v663
      %v680 = vadd.f32 %v594, %v664
      %v681 = vadd.f32 %v599, %v665
      %v682 = vadd.f32 %v604, %v666
      %v683 = vadd.f32 %v609, %v667
      %v684 = vadd.f32 %v614, %v668
      %v685 = vadd.f32 %v619, %v669
      %v686 = vmul.f32 %v670, 0.7978846
      %v687 = vmul.f32 %v671, 0.7978846
      %v688 = vmul.f32 %v672, 0.7978846
      %v689 = vmul.f32 %v673, 0.7978846
      %v690 = vmul.f32 %v674, 0.7978846
      %v691 = vmul.f32 %v675, 0.7978846
      %v692 = vmul.f32 %v676, 0.7978846
      %v693 = vmul.f32 %v677, 0.7978846
      %v694 = vmul.f32 %v678, 0.7978846
      %v695 = vmul.f32 %v679, 0.7978846
      %v696 = vmul.f32 %v680, 0.7978846
      %v697 = vmul.f32 %v681, 0.7978846
      %v698 = vmul.f32 %v682, 0.7978846
      %v699 = vmul.f32 %v683, 0.7978846
      %v700 = vmul.f32 %v684, 0.7978846
      %v701 = vmul.f32 %v685, 0.7978846
      %v702 = vtanh.pop %v686
      %v703 = vtanh.pop %v687
      %v704 = vtanh.pop %v688
      %v705 = vtanh.pop %v689
      %v706 = vtanh.pop %v690
      %v707 = vtanh.pop %v691
      %v708 = vtanh.pop %v692
      %v709 = vtanh.pop %v693
      %v710 = vtanh.pop %v694
      %v711 = vtanh.pop %v695
      %v712 = vtanh.pop %v696
      %v713 = vtanh.pop %v697
      %v714 = vtanh.pop %v698
      %v715 = vtanh.pop %v699
      %v716 = vtanh.pop %v700
      %v717 = vtanh.pop %v701
      %v718 = vadd.f32 %v702, 1.0
      %v719 = vadd.f32 %v703, 1.0
      %v720 = vadd.f32 %v704, 1.0
      %v721 = vadd.f32 %v705, 1.0
      %v722 = vadd.f32 %v706, 1.0
      %v723 = vadd.f32 %v707, 1.0
      %v724 = vadd.f32 %v708, 1.0
      %v725 = vadd.f32 %v709, 1.0
      %v726 = vadd.f32 %v710, 1.0
      %v727 = vadd.f32 %v711, 1.0
      %v728 = vadd.f32 %v712, 1.0
      %v729 = vadd.f32 %v713, 1.0
      %v730 = vadd.f32 %v714, 1.0
      %v731 = vadd.f32 %v715, 1.0
      %v732 = vadd.f32 %v716, 1.0
      %v733 = vadd.f32 %v717, 1.0
      %v734 = vmul.f32 %v718, 0.5
      %v735 = vmul.f32 %v719, 0.5
      %v736 = vmul.f32 %v720, 0.5
      %v737 = vmul.f32 %v721, 0.5
      %v738 = vmul.f32 %v722, 0.5
      %v739 = vmul.f32 %v723, 0.5
      %v740 = vmul.f32 %v724, 0.5
      %v741 = vmul.f32 %v725, 0.5
      %v742 = vmul.f32 %v726, 0.5
      %v743 = vmul.f32 %v727, 0.5
      %v744 = vmul.f32 %v728, 0.5
      %v745 = vmul.f32 %v729, 0.5
      %v746 = vmul.f32 %v730, 0.5
      %v747 = vmul.f32 %v731, 0.5
      %v748 = vmul.f32 %v732, 0.5
      %v749 = vmul.f32 %v733, 0.5
      %v750 = vmul.f32 %v544, %v734
      %v751 = vmul.f32 %v549, %v735
      %v752 = vmul.f32 %v554, %v736
      %v753 = vmul.f32 %v559, %v737
      %v754 = vmul.f32 %v564, %v738
      %v755 = vmul.f32 %v569, %v739
      %v756 = vmul.f32 %v574, %v740
      %v757 = vmul.f32 %v579, %v741
      %v758 = vmul.f32 %v584, %v742
      %v759 = vmul.f32 %v589, %v743
      %v760 = vmul.f32 %v594, %v744
      %v761 = vmul.f32 %v599, %v745
      %v762 = vmul.f32 %v604, %v746
      %v763 = vmul.f32 %v609, %v747
      %v764 = vmul.f32 %v614, %v748
      %v765 = vmul.f32 %v619, %v749
      %v766 = vld [vmem:[%s389] sm:$0xff]
      %v768 = vsel %vm428, %v766, 0
      %770 = vmatprep.subr.mxu0 0.0
      %771 = vmatpush1.msra.mxu0 0.0
      %772 = vmatprep.subr.mxu0 0.0
      %773 = vmatpush1.msra.mxu0 0.0
      %774 = vmatprep.subr.mxu0 0.0
      %775 = vmatpush1.msra.mxu0 0.0
      %776 = vmatprep.subr.mxu0 0.0
      %777 = vmatpush1.msra.mxu0 0.0
      %778 = vmatprep.subr.mxu0 0.0
      %779 = vmatpush1.msra.mxu0 0.0
      %780 = vmatprep.subr.mxu0 0.0
      %781 = vmatpush1.msra.mxu0 0.0
      %782 = vmatprep.subr.mxu0 0.0
      %783 = vmatpush1.msra.mxu0 0.0
      %784 = vmatprep.subr.mxu0 0.0
      %785 = vmatpush1.msra.mxu0 0.0
      %786 = vmatprep.subr.mxu0 0.0
      %787 = vmatpush1.msra.mxu0 0.0
      %788 = vmatprep.subr.mxu0 0.0
      %789 = vmatpush1.msra.mxu0 0.0
      %790 = vmatprep.subr.mxu0 0.0
      %791 = vmatpush1.msra.mxu0 0.0
      %792 = vmatprep.subr.mxu0 0.0
      %793 = vmatpush1.msra.mxu0 0.0
      %794 = vmatprep.subr.mxu0 0.0
      %795 = vmatpush1.msra.mxu0 0.0
      %796 = vmatprep.subr.mxu0 0.0
      %797 = vmatpush1.msra.mxu0 0.0
      %798 = vmatprep.subr.mxu0 0.0
      %799 = vmatpush1.msra.mxu0 0.0
      %800 = vmatprep.subr.mxu0 0.0
      %801 = vmatpush1.msra.mxu0 %v404
      %802 = vmatprep.subr.mxu0 0.0
      %803 = vmatpush2.msra.mxu0 0.0
      %804 = vmatprep.subr.mxu0 0.0
      %805 = vmatpush2.msra.mxu0 0.0
      %806 = vmatprep.subr.mxu0 0.0
      %807 = vmatpush2.msra.mxu0 0.0
      %808 = vmatprep.subr.mxu0 0.0
      %809 = vmatpush2.msra.mxu0 0.0
      %810 = vmatprep.subr.mxu0 0.0
      %811 = vmatpush2.msra.mxu0 0.0
      %812 = vmatprep.subr.mxu0 0.0
      %813 = vmatpush2.msra.mxu0 0.0
      %814 = vmatprep.subr.mxu0 0.0
      %815 = vmatpush2.msra.mxu0 0.0
      %816 = vmatprep.subr.mxu0 0.0
      %817 = vmatpush2.msra.mxu0 0.0
      %818 = vmatprep.subr.mxu0 0.0
      %819 = vmatpush2.msra.mxu0 0.0
      %820 = vmatprep.subr.mxu0 0.0
      %821 = vmatpush2.msra.mxu0 0.0
      %822 = vmatprep.subr.mxu0 0.0
      %823 = vmatpush2.msra.mxu0 0.0
      %824 = vmatprep.subr.mxu0 0.0
      %825 = vmatpush2.msra.mxu0 0.0
      %826 = vmatprep.subr.mxu0 0.0
      %827 = vmatpush2.msra.mxu0 0.0
      %828 = vmatprep.subr.mxu0 0.0
      %829 = vmatpush2.msra.mxu0 0.0
      %830 = vmatprep.subr.mxu0 0.0
      %831 = vmatpush2.msra.mxu0 0.0
      %832 = vmatprep.subr.mxu0 0.0
      %833 = vmatpush2.msra.mxu0 0.0
      %834 = vmatprep.mubr.f32.mxu0 0.0
      %835 = vmatmul.mubr.f32.gmra.mxu0 %v768
      %v836 = vpop.f32.mrf.mxu0
      %v837 = vadd.f32 %v426, %v836
      %v838 = vpop.f32.mrf.mxu0
      %839 = vdwg.mxu0
      %v840 = vmul.f32 %v837, %v837
      %v841 = vmul.f32 %v837, %v840
      %v842 = vmul.f32 %v841, 0.044715
      %v843 = vadd.f32 %v837, %v842
      %v844 = vmul.f32 %v843, 0.7978846
      %v845 = vtanh.pop %v844
      %v846 = vadd.f32 %v845, 1.0
      %v847 = vmul.f32 %v846, 0.5
      %v848 = vmul.f32 %v837, %v847
      %p849 = scmp.eq.s32.totalorder %s24, 0
      %s850 = scalar_select %p849, 0.0, 1.0
      %v851 = vstv %s850
      %v852 = vmul.f32 %v848, %v851
      %v853 = vlaneseq
      %v854 = vshrl.u32 %v853, 7
      %vm855 = vcmp.gt.s32.totalorder %v854, 0
      %v856 = vld [vmem:[%s4] sm:$0x1]
      %v857 = vld [vmem:[%s4 + $0x1] sm:$0x1]
      %v858 = vld [vmem:[%s4 + $0x2] sm:$0x1]
      %v859 = vld [vmem:[%s4 + $0x3] sm:$0x1]
      %v860 = vld [vmem:[%s4 + $0x4] sm:$0x1]
      %v861 = vld [vmem:[%s4 + $0x5] sm:$0x1]
      %v862 = vld [vmem:[%s4 + $0x6] sm:$0x1]
      %v863 = vld [vmem:[%s4 + $0x7] sm:$0x1]
      %v864 = vld [vmem:[%s4 + $0x8] sm:$0x1]
      %v865 = vld [vmem:[%s5] sm:$0x1]
      %874 = vrot.lane.b32.xlu0 %v852, 120
      %v875 = vpop.permute.xlu0 %874
      %876 = vrot.lane.b32.xlu0 %v751, 120
      %v877 = vpop.permute.xlu0 %876
      %878 = vrot.lane.b32.xlu0 %v753, 120
      %v879 = vpop.permute.xlu0 %878
      %880 = vrot.lane.b32.xlu0 %v755, 120
      %v881 = vpop.permute.xlu0 %880
      %882 = vrot.lane.b32.xlu0 %v757, 120
      %v883 = vpop.permute.xlu0 %882
      %884 = vrot.lane.b32.xlu0 %v759, 120
      %v885 = vpop.permute.xlu0 %884
      %886 = vrot.lane.b32.xlu0 %v761, 120
      %v887 = vpop.permute.xlu0 %886
      %888 = vrot.lane.b32.xlu0 %v763, 120
      %v889 = vpop.permute.xlu0 %888
      %v898 = vrot.slane %v875, 7
      %v899 = vrot.slane %v877, 7
      %v900 = vrot.slane %v879, 7
      %v901 = vrot.slane %v881, 7
      %v902 = vrot.slane %v883, 7
      %v903 = vrot.slane %v885, 7
      %v904 = vrot.slane %v887, 7
      %v905 = vrot.slane %v889, 7
      %v906 = vsel %vm855, 1, 0
      %vm907 = vcmp.eq.s32.totalorder %v906, 1
      %v908 = vsel %vm907, %v898, 0.0
      %v909 = vsel %vm907, %v899, 0.0
      %v910 = vsel %vm907, %v900, 0.0
      %v911 = vsel %vm907, %v901, 0.0
      %v912 = vsel %vm907, %v902, 0.0
      %v913 = vsel %vm907, %v903, 0.0
      %v914 = vsel %vm907, %v904, 0.0
      %v915 = vsel %vm907, %v905, 0.0
      %v917 = vlaneseq
      %v918 = vshrl.u32 %v917, 7
      %v919 = vsub.s32 0, %v918
      %v920 = vrot.slane %v856, %v919
      %v922 = vmul.f32 %v908, %v920
      %v923 = vmul.f32 %v909, %v920
      %v924 = vmul.f32 %v910, %v920
      %v925 = vmul.f32 %v911, %v920
      %v926 = vmul.f32 %v912, %v920
      %v927 = vmul.f32 %v913, %v920
      %v928 = vmul.f32 %v914, %v920
      %v929 = vmul.f32 %v915, %v920
      %v930 = vadd.f32 %v922, 0.0
      %v931 = vadd.f32 %v923, 0.0
      %v932 = vadd.f32 %v924, 0.0
      %v933 = vadd.f32 %v925, 0.0
      %v934 = vadd.f32 %v926, 0.0
      %v935 = vadd.f32 %v927, 0.0
      %v936 = vadd.f32 %v928, 0.0
      %v937 = vadd.f32 %v929, 0.0
      %v939 = vlaneseq
      %v940 = vshrl.u32 %v939, 7
      %v941 = vsub.s32 0, %v940
      %v942 = vrot.slane %v857, %v941
      %v944 = vmul.f32 %v852, %v942
      %v945 = vmul.f32 %v751, %v942
      %v946 = vmul.f32 %v753, %v942
      %v947 = vmul.f32 %v755, %v942
      %v948 = vmul.f32 %v757, %v942
      %v949 = vmul.f32 %v759, %v942
      %v950 = vmul.f32 %v761, %v942
      %v951 = vmul.f32 %v763, %v942
      %v952 = vadd.f32 %v930, %v944
      %v953 = vadd.f32 %v931, %v945
      %v954 = vadd.f32 %v932, %v946
      %v955 = vadd.f32 %v933, %v947
      %v956 = vadd.f32 %v934, %v948
      %v957 = vadd.f32 %v935, %v949
      %v958 = vadd.f32 %v936, %v950
      %v959 = vadd.f32 %v937, %v951
      %v961 = vlaneseq
      %v962 = vshrl.u32 %v961, 7
      %v963 = vsub.s32 0, %v962
      %v964 = vrot.slane %v858, %v963
      %965 = vrot.lane.b32.xlu0 %v964, 8
      %v966 = vpop.permute.xlu0 %965
      %v968 = vmul.f32 %v852, %v966
      %v969 = vmul.f32 %v751, %v966
      %v970 = vmul.f32 %v753, %v966
      %v971 = vmul.f32 %v755, %v966
      %v972 = vmul.f32 %v757, %v966
      %v973 = vmul.f32 %v759, %v966
      %v974 = vmul.f32 %v761, %v966
      %v975 = vmul.f32 %v763, %v966
      %984 = vrot.lane.b32.xlu0 %v968, 120
      %v985 = vpop.permute.xlu0 %984
      %986 = vrot.lane.b32.xlu0 %v969, 120
      %v987 = vpop.permute.xlu0 %986
      %988 = vrot.lane.b32.xlu0 %v970, 120
      %v989 = vpop.permute.xlu0 %988
      %990 = vrot.lane.b32.xlu0 %v971, 120
      %v991 = vpop.permute.xlu0 %990
      %992 = vrot.lane.b32.xlu0 %v972, 120
      %v993 = vpop.permute.xlu0 %992
      %994 = vrot.lane.b32.xlu0 %v973, 120
      %v995 = vpop.permute.xlu0 %994
      %996 = vrot.lane.b32.xlu0 %v974, 120
      %v997 = vpop.permute.xlu0 %996
      %998 = vrot.lane.b32.xlu0 %v975, 120
      %v999 = vpop.permute.xlu0 %998
      %v1008 = vadd.f32 %v952, %v985
      %v1009 = vadd.f32 %v953, %v987
      %v1010 = vadd.f32 %v954, %v989
      %v1011 = vadd.f32 %v955, %v991
      %v1012 = vadd.f32 %v956, %v993
      %v1013 = vadd.f32 %v957, %v995
      %v1014 = vadd.f32 %v958, %v997
      %v1015 = vadd.f32 %v959, %v999
      %1024 = vrot.lane.b32.xlu0 %v750, 120
      %v1025 = vpop.permute.xlu0 %1024
      %1026 = vrot.lane.b32.xlu0 %v752, 120
      %v1027 = vpop.permute.xlu0 %1026
      %1028 = vrot.lane.b32.xlu0 %v754, 120
      %v1029 = vpop.permute.xlu0 %1028
      %1030 = vrot.lane.b32.xlu0 %v756, 120
      %v1031 = vpop.permute.xlu0 %1030
      %1032 = vrot.lane.b32.xlu0 %v758, 120
      %v1033 = vpop.permute.xlu0 %1032
      %1034 = vrot.lane.b32.xlu0 %v760, 120
      %v1035 = vpop.permute.xlu0 %1034
      %1036 = vrot.lane.b32.xlu0 %v762, 120
      %v1037 = vpop.permute.xlu0 %1036
      %1038 = vrot.lane.b32.xlu0 %v764, 120
      %v1039 = vpop.permute.xlu0 %1038
      %v1048 = vrot.slane %v1025, 7
      %v1049 = vrot.slane %v1027, 7
      %v1050 = vrot.slane %v1029, 7
      %v1051 = vrot.slane %v1031, 7
      %v1052 = vrot.slane %v1033, 7
      %v1053 = vrot.slane %v1035, 7
      %v1054 = vrot.slane %v1037, 7
      %v1055 = vrot.slane %v1039, 7
      %v1056 = vsel %vm907, %v1048, 0.0
      %v1057 = vsel %vm907, %v1049, 0.0
      %v1058 = vsel %vm907, %v1050, 0.0
      %v1059 = vsel %vm907, %v1051, 0.0
      %v1060 = vsel %vm907, %v1052, 0.0
      %v1061 = vsel %vm907, %v1053, 0.0
      %v1062 = vsel %vm907, %v1054, 0.0
      %v1063 = vsel %vm907, %v1055, 0.0
      %v1065 = vlaneseq
      %v1066 = vshrl.u32 %v1065, 7
      %v1067 = vsub.s32 0, %v1066
      %v1068 = vrot.slane %v859, %v1067
      %v1070 = vmul.f32 %v1056, %v1068
      %v1071 = vmul.f32 %v1057, %v1068
      %v1072 = vmul.f32 %v1058, %v1068
      %v1073 = vmul.f32 %v1059, %v1068
      %v1074 = vmul.f32 %v1060, %v1068
      %v1075 = vmul.f32 %v1061, %v1068
      %v1076 = vmul.f32 %v1062, %v1068
      %v1077 = vmul.f32 %v1063, %v1068
      %v1078 = vadd.f32 %v1008, %v1070
      %v1079 = vadd.f32 %v1009, %v1071
      %v1080 = vadd.f32 %v1010, %v1072
      %v1081 = vadd.f32 %v1011, %v1073
      %v1082 = vadd.f32 %v1012, %v1074
      %v1083 = vadd.f32 %v1013, %v1075
      %v1084 = vadd.f32 %v1014, %v1076
      %v1085 = vadd.f32 %v1015, %v1077
      %v1087 = vlaneseq
      %v1088 = vshrl.u32 %v1087, 7
      %v1089 = vsub.s32 0, %v1088
      %v1090 = vrot.slane %v860, %v1089
      %v1092 = vmul.f32 %v750, %v1090
      %v1093 = vmul.f32 %v752, %v1090
      %v1094 = vmul.f32 %v754, %v1090
      %v1095 = vmul.f32 %v756, %v1090
      %v1096 = vmul.f32 %v758, %v1090
      %v1097 = vmul.f32 %v760, %v1090
      %v1098 = vmul.f32 %v762, %v1090
      %v1099 = vmul.f32 %v764, %v1090
      %v1100 = vadd.f32 %v1078, %v1092
      %v1101 = vadd.f32 %v1079, %v1093
      %v1102 = vadd.f32 %v1080, %v1094
      %v1103 = vadd.f32 %v1081, %v1095
      %v1104 = vadd.f32 %v1082, %v1096
      %v1105 = vadd.f32 %v1083, %v1097
      %v1106 = vadd.f32 %v1084, %v1098
      %v1107 = vadd.f32 %v1085, %v1099
      %v1109 = vlaneseq
      %v1110 = vshrl.u32 %v1109, 7
      %v1111 = vsub.s32 0, %v1110
      %v1112 = vrot.slane %v861, %v1111
      %1113 = vrot.lane.b32.xlu0 %v1112, 8
      %v1114 = vpop.permute.xlu0 %1113
      %v1116 = vmul.f32 %v750, %v1114
      %v1117 = vmul.f32 %v752, %v1114
      %v1118 = vmul.f32 %v754, %v1114
      %v1119 = vmul.f32 %v756, %v1114
      %v1120 = vmul.f32 %v758, %v1114
      %v1121 = vmul.f32 %v760, %v1114
      %v1122 = vmul.f32 %v762, %v1114
      %v1123 = vmul.f32 %v764, %v1114
      %1132 = vrot.lane.b32.xlu0 %v1116, 120
      %v1133 = vpop.permute.xlu0 %1132
      %1134 = vrot.lane.b32.xlu0 %v1117, 120
      %v1135 = vpop.permute.xlu0 %1134
      %1136 = vrot.lane.b32.xlu0 %v1118, 120
      %v1137 = vpop.permute.xlu0 %1136
      %1138 = vrot.lane.b32.xlu0 %v1119, 120
      %v1139 = vpop.permute.xlu0 %1138
      %1140 = vrot.lane.b32.xlu0 %v1120, 120
      %v1141 = vpop.permute.xlu0 %1140
      %1142 = vrot.lane.b32.xlu0 %v1121, 120
      %v1143 = vpop.permute.xlu0 %1142
      %1144 = vrot.lane.b32.xlu0 %v1122, 120
      %v1145 = vpop.permute.xlu0 %1144
      %1146 = vrot.lane.b32.xlu0 %v1123, 120
      %v1147 = vpop.permute.xlu0 %1146
      %v1156 = vadd.f32 %v1100, %v1133
      %v1157 = vadd.f32 %v1101, %v1135
      %v1158 = vadd.f32 %v1102, %v1137
      %v1159 = vadd.f32 %v1103, %v1139
      %v1160 = vadd.f32 %v1104, %v1141
      %v1161 = vadd.f32 %v1105, %v1143
      %v1162 = vadd.f32 %v1106, %v1145
      %v1163 = vadd.f32 %v1107, %v1147
      %1165 = vrot.lane.b32.xlu0 %v765, 120
      %v1166 = vpop.permute.xlu0 %1165
      %v1168 = vrot.slane %v1166, 7
      %v1169 = vsel %vm907, %v1168, 0.0
      %v1171 = vlaneseq
      %v1172 = vshrl.u32 %v1171, 7
      %v1173 = vsub.s32 0, %v1172
      %v1174 = vrot.slane %v862, %v1173
      %v1176 = vmul.f32 %v909, %v1174
      %v1177 = vmul.f32 %v910, %v1174
      %v1178 = vmul.f32 %v911, %v1174
      %v1179 = vmul.f32 %v912, %v1174
      %v1180 = vmul.f32 %v913, %v1174
      %v1181 = vmul.f32 %v914, %v1174
      %v1182 = vmul.f32 %v915, %v1174
      %v1183 = vmul.f32 %v1169, %v1174
      %v1184 = vadd.f32 %v1156, %v1176
      %v1185 = vadd.f32 %v1157, %v1177
      %v1186 = vadd.f32 %v1158, %v1178
      %v1187 = vadd.f32 %v1159, %v1179
      %v1188 = vadd.f32 %v1160, %v1180
      %v1189 = vadd.f32 %v1161, %v1181
      %v1190 = vadd.f32 %v1162, %v1182
      %v1191 = vadd.f32 %v1163, %v1183
      %v1193 = vlaneseq
      %v1194 = vshrl.u32 %v1193, 7
      %v1195 = vsub.s32 0, %v1194
      %v1196 = vrot.slane %v863, %v1195
      %v1198 = vmul.f32 %v751, %v1196
      %v1199 = vmul.f32 %v753, %v1196
      %v1200 = vmul.f32 %v755, %v1196
      %v1201 = vmul.f32 %v757, %v1196
      %v1202 = vmul.f32 %v759, %v1196
      %v1203 = vmul.f32 %v761, %v1196
      %v1204 = vmul.f32 %v763, %v1196
      %v1205 = vmul.f32 %v765, %v1196
      %v1206 = vadd.f32 %v1184, %v1198
      %v1207 = vadd.f32 %v1185, %v1199
      %v1208 = vadd.f32 %v1186, %v1200
      %v1209 = vadd.f32 %v1187, %v1201
      %v1210 = vadd.f32 %v1188, %v1202
      %v1211 = vadd.f32 %v1189, %v1203
      %v1212 = vadd.f32 %v1190, %v1204
      %v1213 = vadd.f32 %v1191, %v1205
      %v1215 = vlaneseq
      %v1216 = vshrl.u32 %v1215, 7
      %v1217 = vsub.s32 0, %v1216
      %v1218 = vrot.slane %v864, %v1217
      %1219 = vrot.lane.b32.xlu0 %v1218, 8
      %v1220 = vpop.permute.xlu0 %1219
      %v1222 = vmul.f32 %v751, %v1220
      %v1223 = vmul.f32 %v753, %v1220
      %v1224 = vmul.f32 %v755, %v1220
      %v1225 = vmul.f32 %v757, %v1220
      %v1226 = vmul.f32 %v759, %v1220
      %v1227 = vmul.f32 %v761, %v1220
      %v1228 = vmul.f32 %v763, %v1220
      %v1229 = vmul.f32 %v765, %v1220
      %1238 = vrot.lane.b32.xlu0 %v1222, 120
      %v1239 = vpop.permute.xlu0 %1238
      %1240 = vrot.lane.b32.xlu0 %v1223, 120
      %v1241 = vpop.permute.xlu0 %1240
      %1242 = vrot.lane.b32.xlu0 %v1224, 120
      %v1243 = vpop.permute.xlu0 %1242
      %1244 = vrot.lane.b32.xlu0 %v1225, 120
      %v1245 = vpop.permute.xlu0 %1244
      %1246 = vrot.lane.b32.xlu0 %v1226, 120
      %v1247 = vpop.permute.xlu0 %1246
      %1248 = vrot.lane.b32.xlu0 %v1227, 120
      %v1249 = vpop.permute.xlu0 %1248
      %1250 = vrot.lane.b32.xlu0 %v1228, 120
      %v1251 = vpop.permute.xlu0 %1250
      %1252 = vrot.lane.b32.xlu0 %v1229, 120
      %v1253 = vpop.permute.xlu0 %1252
      %v1262 = vadd.f32 %v1206, %v1239
      %v1263 = vadd.f32 %v1207, %v1241
      %v1264 = vadd.f32 %v1208, %v1243
      %v1265 = vadd.f32 %v1209, %v1245
      %v1266 = vadd.f32 %v1210, %v1247
      %v1267 = vadd.f32 %v1211, %v1249
      %v1268 = vadd.f32 %v1212, %v1251
      %v1269 = vadd.f32 %v1213, %v1253
      %v1271 = vlaneseq
      %v1272 = vshrl.u32 %v1271, 7
      %v1273 = vsub.s32 0, %v1272
      %v1274 = vrot.slane %v865, %v1273
      %v1276 = vadd.f32 %v1262, %v1274
      %v1277 = vadd.f32 %v1263, %v1274
      %v1278 = vadd.f32 %v1264, %v1274
      %v1279 = vadd.f32 %v1265, %v1274
      %v1280 = vadd.f32 %v1266, %v1274
      %v1281 = vadd.f32 %v1267, %v1274
      %v1282 = vadd.f32 %v1268, %v1274
      %v1283 = vadd.f32 %v1269, %v1274
      %v1284 = vmul.f32 %v1276, %v1276
      %v1285 = vmul.f32 %v1277, %v1277
      %v1286 = vmul.f32 %v1278, %v1278
      %v1287 = vmul.f32 %v1279, %v1279
      %v1288 = vmul.f32 %v1280, %v1280
      %v1289 = vmul.f32 %v1281, %v1281
      %v1290 = vmul.f32 %v1282, %v1282
      %v1291 = vmul.f32 %v1283, %v1283
      %v1292 = vmul.f32 %v1276, %v1284
      %v1293 = vmul.f32 %v1277, %v1285
      %v1294 = vmul.f32 %v1278, %v1286
      %v1295 = vmul.f32 %v1279, %v1287
      %v1296 = vmul.f32 %v1280, %v1288
      %v1297 = vmul.f32 %v1281, %v1289
      %v1298 = vmul.f32 %v1282, %v1290
      %v1299 = vmul.f32 %v1283, %v1291
      %v1300 = vmul.f32 %v1292, 0.044715
      %v1301 = vmul.f32 %v1293, 0.044715
      %v1302 = vmul.f32 %v1294, 0.044715
      %v1303 = vmul.f32 %v1295, 0.044715
      %v1304 = vmul.f32 %v1296, 0.044715
      %v1305 = vmul.f32 %v1297, 0.044715
      %v1306 = vmul.f32 %v1298, 0.044715
      %v1307 = vmul.f32 %v1299, 0.044715
      %v1308 = vadd.f32 %v1276, %v1300
      %v1309 = vadd.f32 %v1277, %v1301
      %v1310 = vadd.f32 %v1278, %v1302
      %v1311 = vadd.f32 %v1279, %v1303
      %v1312 = vadd.f32 %v1280, %v1304
      %v1313 = vadd.f32 %v1281, %v1305
      %v1314 = vadd.f32 %v1282, %v1306
      %v1315 = vadd.f32 %v1283, %v1307
      %v1316 = vmul.f32 %v1308, 0.7978846
      %v1317 = vmul.f32 %v1309, 0.7978846
      %v1318 = vmul.f32 %v1310, 0.7978846
      %v1319 = vmul.f32 %v1311, 0.7978846
      %v1320 = vmul.f32 %v1312, 0.7978846
      %v1321 = vmul.f32 %v1313, 0.7978846
      %v1322 = vmul.f32 %v1314, 0.7978846
      %v1323 = vmul.f32 %v1315, 0.7978846
      %v1324 = vtanh.pop %v1316
      %v1325 = vtanh.pop %v1317
      %v1326 = vtanh.pop %v1318
      %v1327 = vtanh.pop %v1319
      %v1328 = vtanh.pop %v1320
      %v1329 = vtanh.pop %v1321
      %v1330 = vtanh.pop %v1322
      %v1331 = vtanh.pop %v1323
      %v1332 = vadd.f32 %v1324, 1.0
      %v1333 = vadd.f32 %v1325, 1.0
      %v1334 = vadd.f32 %v1326, 1.0
      %v1335 = vadd.f32 %v1327, 1.0
      %v1336 = vadd.f32 %v1328, 1.0
      %v1337 = vadd.f32 %v1329, 1.0
      %v1338 = vadd.f32 %v1330, 1.0
      %v1339 = vadd.f32 %v1331, 1.0
      %v1340 = vmul.f32 %v1332, 0.5
      %v1341 = vmul.f32 %v1333, 0.5
      %v1342 = vmul.f32 %v1334, 0.5
      %v1343 = vmul.f32 %v1335, 0.5
      %v1344 = vmul.f32 %v1336, 0.5
      %v1345 = vmul.f32 %v1337, 0.5
      %v1346 = vmul.f32 %v1338, 0.5
      %v1347 = vmul.f32 %v1339, 0.5
      %v1348 = vmul.f32 %v1276, %v1340
      %v1349 = vmul.f32 %v1277, %v1341
      %v1350 = vmul.f32 %v1278, %v1342
      %v1351 = vmul.f32 %v1279, %v1343
      %v1352 = vmul.f32 %v1280, %v1344
      %v1353 = vmul.f32 %v1281, %v1345
      %v1354 = vmul.f32 %v1282, %v1346
      %v1355 = vmul.f32 %v1283, %v1347
      %v1356 = vld [vmem:[%s6] sm:$0xff]
      %v1357 = vld [vmem:[%s7] sm:$0x1]
      %v1359 = vlaneseq
      %v1360 = vshrl.u32 %v1359, 7
      %v1361 = vsub.s32 0, %v1360
      %v1362 = vrot.slane %v1357, %v1361
      %v1365 = vsel %vm428, %v1348, 0
      %v1368 = vsel %vm428, %v1349, 0
      %v1371 = vsel %vm428, %v1350, 0
      %v1374 = vsel %vm428, %v1351, 0
      %v1377 = vsel %vm428, %v1352, 0
      %v1380 = vsel %vm428, %v1353, 0
      %v1383 = vsel %vm428, %v1354, 0
      %v1386 = vsel %vm428, %v1355, 0
      %1388 = vmatprep.subr.mxu0 0.0
      %1389 = vmatpush1.msra.mxu0 0.0
      %1390 = vmatprep.subr.mxu0 0.0
      %1391 = vmatpush1.msra.mxu0 0.0
      %1392 = vmatprep.subr.mxu0 0.0
      %1393 = vmatpush1.msra.mxu0 0.0
      %1394 = vmatprep.subr.mxu0 0.0
      %1395 = vmatpush1.msra.mxu0 0.0
      %1396 = vmatprep.subr.mxu0 0.0
      %1397 = vmatpush1.msra.mxu0 0.0
      %1398 = vmatprep.subr.mxu0 0.0
      %1399 = vmatpush1.msra.mxu0 0.0
      %1400 = vmatprep.subr.mxu0 0.0
      %1401 = vmatpush1.msra.mxu0 0.0
      %1402 = vmatprep.subr.mxu0 0.0
      %1403 = vmatpush1.msra.mxu0 0.0
      %1404 = vmatprep.subr.mxu0 0.0
      %1405 = vmatpush1.msra.mxu0 0.0
      %1406 = vmatprep.subr.mxu0 0.0
      %1407 = vmatpush1.msra.mxu0 0.0
      %1408 = vmatprep.subr.mxu0 0.0
      %1409 = vmatpush1.msra.mxu0 0.0
      %1410 = vmatprep.subr.mxu0 0.0
      %1411 = vmatpush1.msra.mxu0 0.0
      %1412 = vmatprep.subr.mxu0 0.0
      %1413 = vmatpush1.msra.mxu0 0.0
      %1414 = vmatprep.subr.mxu0 0.0
      %1415 = vmatpush1.msra.mxu0 0.0
      %1416 = vmatprep.subr.mxu0 0.0
      %1417 = vmatpush1.msra.mxu0 0.0
      %1418 = vmatprep.subr.mxu0 0.0
      %1419 = vmatpush1.msra.mxu0 %v1356
      %1420 = vmatprep.subr.mxu0 0.0
      %1421 = vmatpush2.msra.mxu0 0.0
      %1422 = vmatprep.subr.mxu0 0.0
      %1423 = vmatpush2.msra.mxu0 0.0
      %1424 = vmatprep.subr.mxu0 0.0
      %1425 = vmatpush2.msra.mxu0 0.0
      %1426 = vmatprep.subr.mxu0 0.0
      %1427 = vmatpush2.msra.mxu0 0.0
      %1428 = vmatprep.subr.mxu0 0.0
      %1429 = vmatpush2.msra.mxu0 0.0
      %1430 = vmatprep.subr.mxu0 0.0
      %1431 = vmatpush2.msra.mxu0 0.0
      %1432 = vmatprep.subr.mxu0 0.0
      %1433 = vmatpush2.msra.mxu0 0.0
      %1434 = vmatprep.subr.mxu0 0.0
      %1435 = vmatpush2.msra.mxu0 0.0
      %1436 = vmatprep.subr.mxu0 0.0
      %1437 = vmatpush2.msra.mxu0 0.0
      %1438 = vmatprep.subr.mxu0 0.0
      %1439 = vmatpush2.msra.mxu0 0.0
      %1440 = vmatprep.subr.mxu0 0.0
      %1441 = vmatpush2.msra.mxu0 0.0
      %1442 = vmatprep.subr.mxu0 0.0
      %1443 = vmatpush2.msra.mxu0 0.0
      %1444 = vmatprep.subr.mxu0 0.0
      %1445 = vmatpush2.msra.mxu0 0.0
      %1446 = vmatprep.subr.mxu0 0.0
      %1447 = vmatpush2.msra.mxu0 0.0
      %1448 = vmatprep.subr.mxu0 0.0
      %1449 = vmatpush2.msra.mxu0 0.0
      %1450 = vmatprep.subr.mxu0 0.0
      %1451 = vmatpush2.msra.mxu0 0.0
      %1452 = vmatprep.mubr.f32.mxu0 0.0
      %1453 = vmatmul.mubr.f32.gmra.mxu0 %v1365
      %v1454 = vpop.f32.mrf.mxu0
      %v1455 = vadd.f32 %v1362, %v1454
      %v1456 = vpop.f32.mrf.mxu0
      %1457 = vmatprep.mubr.f32.mxu0 0.0
      %1458 = vmatmul.mubr.f32.gmra.mxu0 %v1368
      %v1459 = vpop.f32.mrf.mxu0
      %v1460 = vadd.f32 %v1362, %v1459
      %v1461 = vpop.f32.mrf.mxu0
      %1462 = vmatprep.mubr.f32.mxu0 0.0
      %1463 = vmatmul.mubr.f32.gmra.mxu0 %v1371
      %v1464 = vpop.f32.mrf.mxu0
      %v1465 = vadd.f32 %v1362, %v1464
      %v1466 = vpop.f32.mrf.mxu0
      %1467 = vmatprep.mubr.f32.mxu0 0.0
      %1468 = vmatmul.mubr.f32.gmra.mxu0 %v1374
      %v1469 = vpop.f32.mrf.mxu0
      %v1470 = vadd.f32 %v1362, %v1469
      %v1471 = vpop.f32.mrf.mxu0
      %1472 = vmatprep.mubr.f32.mxu0 0.0
      %1473 = vmatmul.mubr.f32.gmra.mxu0 %v1377
      %v1474 = vpop.f32.mrf.mxu0
      %v1475 = vadd.f32 %v1362, %v1474
      %v1476 = vpop.f32.mrf.mxu0
      %1477 = vmatprep.mubr.f32.mxu0 0.0
      %1478 = vmatmul.mubr.f32.gmra.mxu0 %v1380
      %v1479 = vpop.f32.mrf.mxu0
      %v1480 = vadd.f32 %v1362, %v1479
      %v1481 = vpop.f32.mrf.mxu0
      %1482 = vmatprep.mubr.f32.mxu0 0.0
      %1483 = vmatmul.mubr.f32.gmra.mxu0 %v1383
      %v1484 = vpop.f32.mrf.mxu0
      %v1485 = vadd.f32 %v1362, %v1484
      %v1486 = vpop.f32.mrf.mxu0
      %1487 = vmatprep.mubr.f32.mxu0 0.0
      %1488 = vmatmul.mubr.f32.gmra.mxu0 %v1386
      %v1489 = vpop.f32.mrf.mxu0
      %v1490 = vadd.f32 %v1362, %v1489
      %v1491 = vpop.f32.mrf.mxu0
      %1492 = vdwg.mxu0
      %1493 = vst.msk [vmem:[%s402] sm:$0xff] %vm428, %v1455
      %1494 = vst.msk [vmem:[%s402 + $0x8] sm:$0xff] %vm428, %v1460
      %1495 = vst.msk [vmem:[%s402 + $0x10] sm:$0xff] %vm428, %v1465
      %1496 = vst.msk [vmem:[%s402 + $0x18] sm:$0xff] %vm428, %v1470
      %1497 = vst.msk [vmem:[%s402 + $0x20] sm:$0xff] %vm428, %v1475
      %1498 = vst.msk [vmem:[%s402 + $0x28] sm:$0xff] %vm428, %v1480
      %1499 = vst.msk [vmem:[%s402 + $0x30] sm:$0xff] %vm428, %v1485
      %1500 = vst.msk [vmem:[%s402 + $0x38] sm:$0xff] %vm428, %v1490
      %s1501 = smul.u32 8, %s24
      %p1502 = scmp.lt.s32.totalorder %s23, 1
      %s1503 = scalar_select %p1502, %s23, 1
      %p1504 = scmp.lt.s32.totalorder %s1501, 7
      %s1505 = scalar_select %p1504, %s1501, 7
      %s1506 = smul.addr %s1503, 8
      %s1507 = sadd.s32 %s1505, %s1506
      %s1508 = smul.addr %s1507, 8
      %s1509 = scalar_lea.vmem %s8, %s1508
      // Predicated region
      $region53: #{_lambda_.1} parent=51 // pred_check
        %p1510 = pneg %p241
      $region54: #{_lambda_.1} parent=51 // pred_check_branch
        %1512 = sbr.rel (%p1510) target = $region56
      $region55: #{_lambda_.1} parent=51 // pred_region
        %s1513 = smul.u32 8, %s24
      $region56: #{_lambda_.1} parent=51 // pred_fallthru
        _
    $region52: #{_lambda_.1} parent=5 // pred_fallthru
      _
    %p1514 = scmp.le.s32.totalorder 2, %s14
    // Predicated region
    $region57: #{_lambda_.1} parent=5 // pred_check
      %p1515 = pneg %p1514
    $region58: #{_lambda_.1} parent=5 // pred_check_branch
      %1517 = sbr.rel (%p1515) target = $region60
    $region59: #{_lambda_.1} parent=5 // pred_region
      %s1518 = ssub.s32 %s14, 2
      // Predicated region
      $region61: #{_lambda_.1} parent=59 // pred_check
        %p1519 = pneg %p247
      $region62: #{_lambda_.1} parent=59 // pred_check_branch
        %1521 = sbr.rel (%p1519) target = $region64
      $region63: #{_lambda_.1} parent=59 // pred_region
        %s1522 = smul.u32 8, %s26
        %p1523 = scmp.lt.s32.totalorder %s25, 1
        %s1524 = scalar_select %p1523, %s25, 1
        %p1525 = scmp.lt.s32.totalorder %s1522, 7
        %s1526 = scalar_select %p1525, %s1522, 7
        %s1527 = smul.addr %s1524, 8
        %s1528 = sadd.s32 %s1526, %s1527
        %s1529 = smul.addr %s1528, 8
        %s1530 = scalar_lea.vmem %s8, %s1529
      $region64: #{_lambda_.1} parent=59 // pred_fallthru
        _
    $region60: #{_lambda_.1} parent=5 // pred_fallthru
      _
  $region6: #{_lambda_.1} parent=0 // loop_footer
    %s18 = sadd.s32 1, %s14
  $region7: #{_lambda_.1} parent=0 // loop_footer_branch
    %13 = sbr.rel target = $region3
  $region8: #{_lambda_.1} parent=0 // loop_exit
    _

</llo_original>
